<compile_context>
chip_gen: v7x
topology: tpu7x:2x2x1
jax: 0.10.0
libtpu: 0.0.40
codegen_flags: <defaults>
</compile_context>

<pallas_src>
import jax
import jax.numpy as jnp
from jax.experimental import pallas as pl
from jax.experimental.pallas import tpu as pltpu

NEG_SLOPE = 0.01   # torch.nn.LeakyReLU default
BN_EPS = 1e-5

# Problem sizes (synthetic but consistent with the module's construction)
CAT_DIMS = [4, 3, 5, 24, 2, 6, 8, 9]                        # 8 categorical features
EMB_DIMS = [(x, min(50, (x + 1) // 2)) for x in CAT_DIMS]    # (num_emb, emb_dim)
NO_OF_EMBS = sum(d for _, d in EMB_DIMS)                     # 32
NO_OF_CONT = 5
H1, H2, H3, H4 = 512, 256, 128, 64
N_LABELS = 3
BATCH = 8

# Flat-index offsets of each categorical feature inside the stacked table.
CAT_OFFSETS = [0]
for _n in CAT_DIMS[:-1]:
    CAT_OFFSETS.append(CAT_OFFSETS[-1] + _n)
TOTAL_CAT = sum(CAT_DIMS)          # 61

# Fused first-layer input layout (one K=128 matmul):
#   lanes [0, 61)  : multi-hot of the flat categorical code
#   lanes [64, 69) : raw continuous features (BN scale folded into the weight)
TOTAL_CAT_PAD = 64
CONT_LANE_OFF = TOTAL_CAT_PAD
IN_PAD = 128

# Padded head sizes so every matmul / store is lane-dense.
H4_PAD = 128
OUT_PAD = 128                      # sliced to N_LABELS outside

# Offsets into the single concatenated bias vector (all 128-lane aligned).
B1_OFF = 0
B2_OFF = H1
B3_OFF = H1 + H2
B4_OFF = H1 + H2 + H3
B5_OFF = H1 + H2 + H3 + H4_PAD
BIAS_WIDTH = B5_OFF + OUT_PAD      # 1152

# Sublane offsets of w3 / w4 / w5 inside the stacked (512, 128) bf16 weight buffer
# (all multiples of the 16-sublane bf16 tile -> static slices are zero-cost views).
W3_OFF = 0
W4_OFF = H2
W5_OFF = H2 + H3
W345_ROWS = H2 + H3 + H4_PAD       # 512


def _leaky_relu(x):
    return jnp.where(x > 0, x, NEG_SLOPE * x)


def _tree_reduce(op, xs):
    """Log-depth pairwise reduction (keeps the VPU dependency chain short)."""
    xs = list(xs)
    while len(xs) > 1:
        nxt = [op(xs[i], xs[i + 1]) for i in range(0, len(xs) - 1, 2)]
        if len(xs) % 2:
            nxt.append(xs[-1])
        xs = nxt
    return xs[0]


def classifier_kernel(cat_ref, cont_ref, w1_ref, w2_ref, w345_ref, bias_ref, out_ref):
    batch = cat_ref.shape[0]
    cat = cat_ref[...]                                       # (B, 8) int32
    cont = cont_ref[...]                                      # (B, 5) f32
    lanes = jax.lax.broadcasted_iota(jnp.int32, (batch, IN_PAD), 1)

    # Multi-hot of the 8 flat categorical codes: log-depth boolean OR tree.
    masks = [lanes == (cat[:, f:f + 1] + CAT_OFFSETS[f]) for f in range(len(CAT_DIMS))]
    x = _tree_reduce(jnp.logical_or, masks).astype(jnp.float32)
    # Place the 5 continuous features at lanes CONT_LANE_OFF .. CONT_LANE_OFF+4.
    cparts = [jnp.where(lanes == CONT_LANE_OFF + j, cont[:, j:j + 1], 0.0)
              for j in range(NO_OF_CONT)]
    x = (x + _tree_reduce(jnp.add, cparts)).astype(jnp.bfloat16)

    # Static slices of the single concatenated bias vector (f32 epilogue math).
    b1 = bias_ref[:, B1_OFF:B1_OFF + H1]
    b2 = bias_ref[:, B2_OFF:B2_OFF + H2]
    b3 = bias_ref[:, B3_OFF:B3_OFF + H3]
    b4 = bias_ref[:, B4_OFF:B4_OFF + H4_PAD]
    b5 = bias_ref[:, B5_OFF:B5_OFF + OUT_PAD]

    # Fused (embedding lookup + first-BN + linear1) as ONE K=128 matmul.
    h = jnp.dot(x, w1_ref[...], preferred_element_type=jnp.float32) + b1
    h = _leaky_relu(h)
    # Hidden BNs are folded into the following linears -> plain matmul chain.
    h = jnp.dot(h.astype(jnp.bfloat16), w2_ref[...],
                preferred_element_type=jnp.float32) + b2
    h = _leaky_relu(h)
    h = jnp.dot(h.astype(jnp.bfloat16), w345_ref[W3_OFF:W3_OFF + H2, :],
                preferred_element_type=jnp.float32) + b3
    h = _leaky_relu(h)
    h = jnp.dot(h.astype(jnp.bfloat16), w345_ref[W4_OFF:W4_OFF + H3, :],
                preferred_element_type=jnp.float32) + b4
    h = _leaky_relu(h)
    logits = jnp.dot(h.astype(jnp.bfloat16), w345_ref[W5_OFF:W5_OFF + H4_PAD, :],
                     preferred_element_type=jnp.float32) + b5
    out_ref[...] = jax.nn.sigmoid(logits)


def init_params(key):
    ks = jax.random.split(key, 48)          # 38 keys consumed; headroom
    ki = iter(ks)
    p = {}
    p["emb_tables"] = [
        0.1 * jax.random.normal(next(ki), (n, d), jnp.float32) for n, d in EMB_DIMS
    ]

    def lin(kw, kb, fan_in, fan_out):
        w = 0.05 * jax.random.normal(kw, (fan_in, fan_out), jnp.float32)
        b = 0.05 * jax.random.normal(kb, (1, fan_out), jnp.float32)
        return w, b

    p["w1"], p["b1"] = lin(next(ki), next(ki), NO_OF_EMBS + NO_OF_CONT, H1)
    p["w2"], p["b2"] = lin(next(ki), next(ki), H1, H2)
    p["w3"], p["b3"] = lin(next(ki), next(ki), H2, H3)
    p["w4"], p["b4"] = lin(next(ki), next(ki), H3, H4)
    p["w5"], p["b5"] = lin(next(ki), next(ki), H4, N_LABELS)

    def bn(kg, kb, km, kv, n):
        gamma = 1.0 + 0.1 * jax.random.normal(kg, (1, n), jnp.float32)
        beta = 0.1 * jax.random.normal(kb, (1, n), jnp.float32)
        mean = 0.1 * jax.random.normal(km, (1, n), jnp.float32)
        var = 0.5 + jnp.abs(jax.random.normal(kv, (1, n), jnp.float32))
        scale = gamma / jnp.sqrt(var + BN_EPS)       # eval-mode BN -> scale/shift
        shift = beta - mean * scale
        return scale, shift

    p["s_cont"], p["t_cont"] = bn(next(ki), next(ki), next(ki), next(ki), NO_OF_CONT)
    p["s1"], p["t1"] = bn(next(ki), next(ki), next(ki), next(ki), H1)
    p["s2"], p["t2"] = bn(next(ki), next(ki), next(ki), next(ki), H2)
    p["s3"], p["t3"] = bn(next(ki), next(ki), next(ki), next(ki), H3)
    p["s4"], p["t4"] = bn(next(ki), next(ki), next(ki), next(ki), H4)
    return p


def prepare_params(p):
    """One-time prep: fold embeddings + eval-mode BNs into the linears, pack, cast bf16."""
    bf16, f32 = jnp.bfloat16, jnp.float32
    # Block-diagonal stacked embedding matrix: multihot @ e_bd == concat of 8 gathers.
    e_bd = jnp.zeros((TOTAL_CAT_PAD, NO_OF_EMBS), f32)
    r = c = 0
    for (n, d), tbl in zip(EMB_DIMS, p["emb_tables"]):
        e_bd = e_bd.at[r:r + n, c:c + d].set(tbl)
        r += n
        c += d
    w1a = p["w1"][:NO_OF_EMBS]          # (32, H1)  categorical block
    w1b = p["w1"][NO_OF_EMBS:]          # (5,  H1)  continuous block
    # Single fused (128, H1) first-layer weight:
    #   rows [0, 64)  : embeddings folded into linear1's categorical block
    #   rows [64, 69) : first BN's scale folded into linear1's continuous block
    w1 = jnp.zeros((IN_PAD, H1), f32)
    w1 = w1.at[:TOTAL_CAT_PAD].set(e_bd @ w1a)
    w1 = w1.at[CONT_LANE_OFF:CONT_LANE_OFF + NO_OF_CONT].set(
        p["s_cont"].reshape(NO_OF_CONT, 1) * w1b)
    b1 = p["b1"] + p["t_cont"] @ w1b

    # Fold each hidden BatchNorm (eval mode) into the following Linear:
    # (leaky*s + t) @ W + b == leaky @ (s^T * W) + (t @ W + b)
    w2 = p["s1"].reshape(H1, 1) * p["w2"]
    b2 = p["b2"] + p["t1"] @ p["w2"]
    w3 = p["s2"].reshape(H2, 1) * p["w3"]
    b3 = p["b3"] + p["t2"] @ p["w3"]
    w4 = p["s3"].reshape(H3, 1) * p["w4"]
    b4 = p["b4"] + p["t3"] @ p["w4"]
    w5 = p["s4"].reshape(H4, 1) * p["w5"]
    b5 = p["b5"] + p["t4"] @ p["w5"]

    # Lane-pad w4/b4 to 128 and w5/b5 to (128, 128) -> dense matmuls & stores.
    w4p = jnp.zeros((H3, H4_PAD), f32).at[:, :H4].set(w4)
    b4p = jnp.zeros((1, H4_PAD), f32).at[:, :H4].set(b4)
    w5p = jnp.zeros((H4_PAD, OUT_PAD), f32).at[:H4, :N_LABELS].set(w5)
    b5p = jnp.zeros((1, OUT_PAD), f32).at[:, :N_LABELS].set(b5)

    # Sublane-stack w3 / w4 / w5 into one bf16 buffer; one concatenated bias vector.
    w345 = jnp.concatenate([w3, w4p, w5p], axis=0)            # (512, 128)
    bias = jnp.concatenate([b1, b2, b3, b4p, b5p], axis=1)    # (1, 1152)
    assert w345.shape == (W345_ROWS, OUT_PAD)
    assert bias.shape == (1, BIAS_WIDTH)
    return {"w1": w1.astype(bf16), "w2": w2.astype(bf16),
            "w345": w345.astype(bf16), "bias": bias}


@jax.jit
def classifier_forward(cat_data, cont_data, prepped):
    vmem = pltpu.MemorySpace.VMEM
    out = pl.pallas_call(
        classifier_kernel,
        out_shape=jax.ShapeDtypeStruct((cat_data.shape[0], OUT_PAD), jnp.float32),
        in_specs=[pl.BlockSpec(memory_space=vmem)] * 6,
        out_specs=pl.BlockSpec(memory_space=vmem),
    )(cat_data, cont_data,
      prepped["w1"], prepped["w2"], prepped["w345"], prepped["bias"])
    return out[:, :N_LABELS]


def reference_forward(cat_data, cont_data, params):
    emb = jnp.concatenate(
        [params["emb_tables"][i][cat_data[:, i]] for i in range(len(EMB_DIMS))],
        axis=1,
    )
    cont_n = cont_data * params["s_cont"] + params["t_cont"]
    x = jnp.concatenate([emb, cont_n], axis=1)

    def block(h, w, b, s, t):
        z = h @ w + b
        z = jnp.where(z > 0, z, NEG_SLOPE * z)
        return z * s + t

    h = block(x, params["w1"], params["b1"], params["s1"], params["t1"])
    h = block(h, params["w2"], params["b2"], params["s2"], params["t2"])
    h = block(h, params["w3"], params["b3"], params["s3"], params["t3"])
    h = block(h, params["w4"], params["b4"], params["s4"], params["t4"])
    return jax.nn.sigmoid(h @ params["w5"] + params["b5"])


if __name__ == "__main__":
    key = jax.random.PRNGKey(0)
    kp, kcat, kcont = jax.random.split(key, 3)
    params = init_params(kp)
    prepped = prepare_params(params)

    cat_cols = [
        jax.random.randint(jax.random.fold_in(kcat, i), (BATCH, 1), 0, CAT_DIMS[i])
        for i in range(len(CAT_DIMS))
    ]
    cat_data = jnp.concatenate(cat_cols, axis=1).astype(jnp.int32)          # [B, 8]
    cont_data = jax.random.normal(kcont, (BATCH, NO_OF_CONT), jnp.float32)  # [B, 5]

    out = classifier_forward(cat_data, cont_data, prepped)
    out = jax.block_until_ready(out)

    ref = reference_forward(cat_data, cont_data, params)
    assert out.shape == (BATCH, N_LABELS)
    assert bool(jnp.all(jnp.isfinite(out)))
    assert bool(jnp.allclose(out, ref, rtol=1e-2, atol=1e-2))

    print("KERNEL_OK")
</pallas_src>

<mosaic_0001>
module attributes {stable_mosaic.version = 11 : i64} {
  func.func @classifier_kernel(%arg0: memref<8x8xi32, #tpu.memory_space<vmem>>, %arg1: memref<8x5xf32, #tpu.memory_space<vmem>>, %arg2: memref<128x512xbf16, #tpu.memory_space<vmem>>, %arg3: memref<512x256xbf16, #tpu.memory_space<vmem>>, %arg4: memref<512x128xbf16, #tpu.memory_space<vmem>>, %arg5: memref<1x1152xf32, #tpu.memory_space<vmem>>, %arg6: memref<8x128xf32, #tpu.memory_space<vmem>>) attributes {dimension_semantics = [], scalar_prefetch = 0 : i64, scratch_operands = 0 : i64, tpu.core_type = #tpu.core_type<tc>} {
    %c0 = arith.constant 0 : index
    %c0_0 = arith.constant 0 : index
    %0 = vector.load %arg0[%c0, %c0_0] : memref<8x8xi32, #tpu.memory_space<vmem>>, vector<8x8xi32>
    %c0_1 = arith.constant 0 : index
    %c0_2 = arith.constant 0 : index
    %1 = vector.load %arg1[%c0_1, %c0_2] : memref<8x5xf32, #tpu.memory_space<vmem>>, vector<8x5xf32>
    %2 = tpu.iota {dimensions = array<i32: 1>} : vector<8x128xi32>
    %3 = vector.extract_strided_slice %0 {offsets = [0, 0], sizes = [8, 1], strides = [1, 1]} : vector<8x8xi32> to vector<8x1xi32>
    %c0_i32 = arith.constant 0 : i32
    %4 = vector.broadcast %c0_i32 : i32 to vector<8x1xi32>
    %5 = arith.addi %3, %4 : vector<8x1xi32>
    %6 = vector.broadcast %5 : vector<8x1xi32> to vector<8x128xi32>
    %7 = arith.cmpi eq, %2, %6 : vector<8x128xi32>
    %8 = vector.extract_strided_slice %0 {offsets = [0, 1], sizes = [8, 1], strides = [1, 1]} : vector<8x8xi32> to vector<8x1xi32>
    %c4_i32 = arith.constant 4 : i32
    %9 = vector.broadcast %c4_i32 : i32 to vector<8x1xi32>
    %10 = arith.addi %8, %9 : vector<8x1xi32>
    %11 = vector.broadcast %10 : vector<8x1xi32> to vector<8x128xi32>
    %12 = arith.cmpi eq, %2, %11 : vector<8x128xi32>
    %13 = vector.extract_strided_slice %0 {offsets = [0, 2], sizes = [8, 1], strides = [1, 1]} : vector<8x8xi32> to vector<8x1xi32>
    %c7_i32 = arith.constant 7 : i32
    %14 = vector.broadcast %c7_i32 : i32 to vector<8x1xi32>
    %15 = arith.addi %13, %14 : vector<8x1xi32>
    %16 = vector.broadcast %15 : vector<8x1xi32> to vector<8x128xi32>
    %17 = arith.cmpi eq, %2, %16 : vector<8x128xi32>
    %18 = vector.extract_strided_slice %0 {offsets = [0, 3], sizes = [8, 1], strides = [1, 1]} : vector<8x8xi32> to vector<8x1xi32>
    %c12_i32 = arith.constant 12 : i32
    %19 = vector.broadcast %c12_i32 : i32 to vector<8x1xi32>
    %20 = arith.addi %18, %19 : vector<8x1xi32>
    %21 = vector.broadcast %20 : vector<8x1xi32> to vector<8x128xi32>
    %22 = arith.cmpi eq, %2, %21 : vector<8x128xi32>
    %23 = vector.extract_strided_slice %0 {offsets = [0, 4], sizes = [8, 1], strides = [1, 1]} : vector<8x8xi32> to vector<8x1xi32>
    %c36_i32 = arith.constant 36 : i32
    %24 = vector.broadcast %c36_i32 : i32 to vector<8x1xi32>
    %25 = arith.addi %23, %24 : vector<8x1xi32>
    %26 = vector.broadcast %25 : vector<8x1xi32> to vector<8x128xi32>
    %27 = arith.cmpi eq, %2, %26 : vector<8x128xi32>
    %28 = vector.extract_strided_slice %0 {offsets = [0, 5], sizes = [8, 1], strides = [1, 1]} : vector<8x8xi32> to vector<8x1xi32>
    %c38_i32 = arith.constant 38 : i32
    %29 = vector.broadcast %c38_i32 : i32 to vector<8x1xi32>
    %30 = arith.addi %28, %29 : vector<8x1xi32>
    %31 = vector.broadcast %30 : vector<8x1xi32> to vector<8x128xi32>
    %32 = arith.cmpi eq, %2, %31 : vector<8x128xi32>
    %33 = vector.extract_strided_slice %0 {offsets = [0, 6], sizes = [8, 1], strides = [1, 1]} : vector<8x8xi32> to vector<8x1xi32>
    %c44_i32 = arith.constant 44 : i32
    %34 = vector.broadcast %c44_i32 : i32 to vector<8x1xi32>
    %35 = arith.addi %33, %34 : vector<8x1xi32>
    %36 = vector.broadcast %35 : vector<8x1xi32> to vector<8x128xi32>
    %37 = arith.cmpi eq, %2, %36 : vector<8x128xi32>
    %38 = vector.extract_strided_slice %0 {offsets = [0, 7], sizes = [8, 1], strides = [1, 1]} : vector<8x8xi32> to vector<8x1xi32>
    %c52_i32 = arith.constant 52 : i32
    %39 = vector.broadcast %c52_i32 : i32 to vector<8x1xi32>
    %40 = arith.addi %38, %39 : vector<8x1xi32>
    %41 = vector.broadcast %40 : vector<8x1xi32> to vector<8x128xi32>
    %42 = arith.cmpi eq, %2, %41 : vector<8x128xi32>
    %43 = arith.ori %7, %12 : vector<8x128xi1>
    %44 = arith.ori %17, %22 : vector<8x128xi1>
    %45 = arith.ori %27, %32 : vector<8x128xi1>
    %46 = arith.ori %37, %42 : vector<8x128xi1>
    %47 = arith.ori %43, %44 : vector<8x128xi1>
    %48 = arith.ori %45, %46 : vector<8x128xi1>
    %49 = arith.ori %47, %48 : vector<8x128xi1>
    %50 = arith.extui %49 : vector<8x128xi1> to vector<8x128xi32>
    %51 = arith.sitofp %50 : vector<8x128xi32> to vector<8x128xf32>
    %c64_i32 = arith.constant 64 : i32
    %52 = vector.broadcast %c64_i32 : i32 to vector<8x128xi32>
    %53 = arith.cmpi eq, %2, %52 : vector<8x128xi32>
    %54 = vector.extract_strided_slice %1 {offsets = [0, 0], sizes = [8, 1], strides = [1, 1]} : vector<8x5xf32> to vector<8x1xf32>
    %cst = arith.constant 0.000000e+00 : f32
    %55 = vector.shape_cast %54 : vector<8x1xf32> to vector<8x1xf32>
    %56 = vector.broadcast %55 : vector<8x1xf32> to vector<8x128xf32>
    %57 = vector.broadcast %cst : f32 to vector<8x128xf32>
    %58 = arith.select %53, %56, %57 : vector<8x128xi1>, vector<8x128xf32>
    %c65_i32 = arith.constant 65 : i32
    %59 = vector.broadcast %c65_i32 : i32 to vector<8x128xi32>
    %60 = arith.cmpi eq, %2, %59 : vector<8x128xi32>
    %61 = vector.extract_strided_slice %1 {offsets = [0, 1], sizes = [8, 1], strides = [1, 1]} : vector<8x5xf32> to vector<8x1xf32>
    %cst_3 = arith.constant 0.000000e+00 : f32
    %62 = vector.shape_cast %61 : vector<8x1xf32> to vector<8x1xf32>
    %63 = vector.broadcast %62 : vector<8x1xf32> to vector<8x128xf32>
    %64 = vector.broadcast %cst_3 : f32 to vector<8x128xf32>
    %65 = arith.select %60, %63, %64 : vector<8x128xi1>, vector<8x128xf32>
    %c66_i32 = arith.constant 66 : i32
    %66 = vector.broadcast %c66_i32 : i32 to vector<8x128xi32>
    %67 = arith.cmpi eq, %2, %66 : vector<8x128xi32>
    %68 = vector.extract_strided_slice %1 {offsets = [0, 2], sizes = [8, 1], strides = [1, 1]} : vector<8x5xf32> to vector<8x1xf32>
    %cst_4 = arith.constant 0.000000e+00 : f32
    %69 = vector.shape_cast %68 : vector<8x1xf32> to vector<8x1xf32>
    %70 = vector.broadcast %69 : vector<8x1xf32> to vector<8x128xf32>
    %71 = vector.broadcast %cst_4 : f32 to vector<8x128xf32>
    %72 = arith.select %67, %70, %71 : vector<8x128xi1>, vector<8x128xf32>
    %c67_i32 = arith.constant 67 : i32
    %73 = vector.broadcast %c67_i32 : i32 to vector<8x128xi32>
    %74 = arith.cmpi eq, %2, %73 : vector<8x128xi32>
    %75 = vector.extract_strided_slice %1 {offsets = [0, 3], sizes = [8, 1], strides = [1, 1]} : vector<8x5xf32> to vector<8x1xf32>
    %cst_5 = arith.constant 0.000000e+00 : f32
    %76 = vector.shape_cast %75 : vector<8x1xf32> to vector<8x1xf32>
    %77 = vector.broadcast %76 : vector<8x1xf32> to vector<8x128xf32>
    %78 = vector.broadcast %cst_5 : f32 to vector<8x128xf32>
    %79 = arith.select %74, %77, %78 : vector<8x128xi1>, vector<8x128xf32>
    %c68_i32 = arith.constant 68 : i32
    %80 = vector.broadcast %c68_i32 : i32 to vector<8x128xi32>
    %81 = arith.cmpi eq, %2, %80 : vector<8x128xi32>
    %82 = vector.extract_strided_slice %1 {offsets = [0, 4], sizes = [8, 1], strides = [1, 1]} : vector<8x5xf32> to vector<8x1xf32>
    %cst_6 = arith.constant 0.000000e+00 : f32
    %83 = vector.shape_cast %82 : vector<8x1xf32> to vector<8x1xf32>
    %84 = vector.broadcast %83 : vector<8x1xf32> to vector<8x128xf32>
    %85 = vector.broadcast %cst_6 : f32 to vector<8x128xf32>
    %86 = arith.select %81, %84, %85 : vector<8x128xi1>, vector<8x128xf32>
    %87 = arith.addf %58, %65 : vector<8x128xf32>
    %88 = arith.addf %72, %79 : vector<8x128xf32>
    %89 = arith.addf %87, %88 : vector<8x128xf32>
    %90 = arith.addf %89, %86 : vector<8x128xf32>
    %91 = arith.addf %51, %90 : vector<8x128xf32>
    %92 = arith.truncf %91 : vector<8x128xf32> to vector<8x128xbf16>
    %c0_7 = arith.constant 0 : index
    %c0_8 = arith.constant 0 : index
    %93 = vector.load %arg5[%c0_7, %c0_8] : memref<1x1152xf32, #tpu.memory_space<vmem>>, vector<1x512xf32>
    %c0_9 = arith.constant 0 : index
    %c512 = arith.constant 512 : index
    %94 = vector.load %arg5[%c0_9, %c512] : memref<1x1152xf32, #tpu.memory_space<vmem>>, vector<1x256xf32>
    %c0_10 = arith.constant 0 : index
    %c768 = arith.constant 768 : index
    %95 = vector.load %arg5[%c0_10, %c768] : memref<1x1152xf32, #tpu.memory_space<vmem>>, vector<1x128xf32>
    %c0_11 = arith.constant 0 : index
    %c896 = arith.constant 896 : index
    %96 = vector.load %arg5[%c0_11, %c896] : memref<1x1152xf32, #tpu.memory_space<vmem>>, vector<1x128xf32>
    %c0_12 = arith.constant 0 : index
    %c1024 = arith.constant 1024 : index
    %97 = vector.load %arg5[%c0_12, %c1024] : memref<1x1152xf32, #tpu.memory_space<vmem>>, vector<1x128xf32>
    %c0_13 = arith.constant 0 : index
    %c0_14 = arith.constant 0 : index
    %98 = vector.load %arg2[%c0_13, %c0_14] : memref<128x512xbf16, #tpu.memory_space<vmem>>, vector<128x512xbf16>
    %cst_15 = arith.constant dense<0.000000e+00> : vector<8x512xf32>
    %99 = tpu.matmul %92, %98, %cst_15 {dimension_numbers = #tpu.dot_dimension_numbers<[1], [0], [0], [1], [0, 0, 1, 1], [], []>} : vector<8x128xbf16>, vector<128x512xbf16>, vector<8x512xf32> -> vector<8x512xf32>
    %100 = vector.broadcast %93 : vector<1x512xf32> to vector<8x512xf32>
    %101 = arith.addf %99, %100 : vector<8x512xf32>
    %cst_16 = arith.constant 0.000000e+00 : f32
    %102 = vector.broadcast %cst_16 : f32 to vector<8x512xf32>
    %103 = arith.cmpf ogt, %101, %102 : vector<8x512xf32>
    %cst_17 = arith.constant 0.00999999977 : f32
    %104 = vector.broadcast %cst_17 : f32 to vector<8x512xf32>
    %105 = arith.mulf %104, %101 : vector<8x512xf32>
    %106 = arith.select %103, %101, %105 : vector<8x512xi1>, vector<8x512xf32>
    %107 = arith.truncf %106 : vector<8x512xf32> to vector<8x512xbf16>
    %c0_18 = arith.constant 0 : index
    %c0_19 = arith.constant 0 : index
    %108 = vector.load %arg3[%c0_18, %c0_19] : memref<512x256xbf16, #tpu.memory_space<vmem>>, vector<512x256xbf16>
    %cst_20 = arith.constant dense<0.000000e+00> : vector<8x256xf32>
    %109 = tpu.matmul %107, %108, %cst_20 {dimension_numbers = #tpu.dot_dimension_numbers<[1], [0], [0], [1], [0, 0, 1, 1], [], []>} : vector<8x512xbf16>, vector<512x256xbf16>, vector<8x256xf32> -> vector<8x256xf32>
    %110 = vector.broadcast %94 : vector<1x256xf32> to vector<8x256xf32>
    %111 = arith.addf %109, %110 : vector<8x256xf32>
    %cst_21 = arith.constant 0.000000e+00 : f32
    %112 = vector.broadcast %cst_21 : f32 to vector<8x256xf32>
    %113 = arith.cmpf ogt, %111, %112 : vector<8x256xf32>
    %cst_22 = arith.constant 0.00999999977 : f32
    %114 = vector.broadcast %cst_22 : f32 to vector<8x256xf32>
    %115 = arith.mulf %114, %111 : vector<8x256xf32>
    %116 = arith.select %113, %111, %115 : vector<8x256xi1>, vector<8x256xf32>
    %117 = arith.truncf %116 : vector<8x256xf32> to vector<8x256xbf16>
    %c0_23 = arith.constant 0 : index
    %c0_24 = arith.constant 0 : index
    %118 = vector.load %arg4[%c0_23, %c0_24] : memref<512x128xbf16, #tpu.memory_space<vmem>>, vector<256x128xbf16>
    %cst_25 = arith.constant dense<0.000000e+00> : vector<8x128xf32>
    %119 = tpu.matmul %117, %118, %cst_25 {dimension_numbers = #tpu.dot_dimension_numbers<[1], [0], [0], [1], [0, 0, 1, 1], [], []>} : vector<8x256xbf16>, vector<256x128xbf16>, vector<8x128xf32> -> vector<8x128xf32>
    %120 = vector.broadcast %95 : vector<1x128xf32> to vector<8x128xf32>
    %121 = arith.addf %119, %120 : vector<8x128xf32>
    %cst_26 = arith.constant 0.000000e+00 : f32
    %122 = vector.broadcast %cst_26 : f32 to vector<8x128xf32>
    %123 = arith.cmpf ogt, %121, %122 : vector<8x128xf32>
    %cst_27 = arith.constant 0.00999999977 : f32
    %124 = vector.broadcast %cst_27 : f32 to vector<8x128xf32>
    %125 = arith.mulf %124, %121 : vector<8x128xf32>
    %126 = arith.select %123, %121, %125 : vector<8x128xi1>, vector<8x128xf32>
    %127 = arith.truncf %126 : vector<8x128xf32> to vector<8x128xbf16>
    %c256 = arith.constant 256 : index
    %c0_28 = arith.constant 0 : index
    %128 = vector.load %arg4[%c256, %c0_28] : memref<512x128xbf16, #tpu.memory_space<vmem>>, vector<128x128xbf16>
    %cst_29 = arith.constant dense<0.000000e+00> : vector<8x128xf32>
    %129 = tpu.matmul %127, %128, %cst_29 {dimension_numbers = #tpu.dot_dimension_numbers<[1], [0], [0], [1], [0, 0, 1, 1], [], []>} : vector<8x128xbf16>, vector<128x128xbf16>, vector<8x128xf32> -> vector<8x128xf32>
    %130 = vector.broadcast %96 : vector<1x128xf32> to vector<8x128xf32>
    %131 = arith.addf %129, %130 : vector<8x128xf32>
    %cst_30 = arith.constant 0.000000e+00 : f32
    %132 = vector.broadcast %cst_30 : f32 to vector<8x128xf32>
    %133 = arith.cmpf ogt, %131, %132 : vector<8x128xf32>
    %cst_31 = arith.constant 0.00999999977 : f32
    %134 = vector.broadcast %cst_31 : f32 to vector<8x128xf32>
    %135 = arith.mulf %134, %131 : vector<8x128xf32>
    %136 = arith.select %133, %131, %135 : vector<8x128xi1>, vector<8x128xf32>
    %137 = arith.truncf %136 : vector<8x128xf32> to vector<8x128xbf16>
    %c384 = arith.constant 384 : index
    %c0_32 = arith.constant 0 : index
    %138 = vector.load %arg4[%c384, %c0_32] : memref<512x128xbf16, #tpu.memory_space<vmem>>, vector<128x128xbf16>
    %cst_33 = arith.constant dense<0.000000e+00> : vector<8x128xf32>
    %139 = tpu.matmul %137, %138, %cst_33 {dimension_numbers = #tpu.dot_dimension_numbers<[1], [0], [0], [1], [0, 0, 1, 1], [], []>} : vector<8x128xbf16>, vector<128x128xbf16>, vector<8x128xf32> -> vector<8x128xf32>
    %140 = vector.broadcast %97 : vector<1x128xf32> to vector<8x128xf32>
    %141 = arith.addf %139, %140 : vector<8x128xf32>
    %142 = arith.negf %141 : vector<8x128xf32>
    %143 = math.exp %142 : vector<8x128xf32>
    %cst_34 = arith.constant 1.000000e+00 : f32
    %144 = vector.broadcast %cst_34 : f32 to vector<8x128xf32>
    %145 = arith.addf %144, %143 : vector<8x128xf32>
    %146 = arith.divf %144, %145 : vector<8x128xf32>
    %c0_35 = arith.constant 0 : index
    %c0_36 = arith.constant 0 : index
    %147 = vector.load %arg6[%c0_35, %c0_36] : memref<8x128xf32, #tpu.memory_space<vmem>>, vector<8x128xf32>
    tpu.vector_store %arg6[%c0_35, %c0_36], %146 {strides = array<i32>} : memref<8x128xf32, #tpu.memory_space<vmem>>, vector<8x128xf32>,
    return
  }
}

</mosaic_0001>

<llo_original>
// kernel: classifier_forward.1
$region0: #{classifier_forward.1}
  #allocation0 [shape = 'u32[]', space=smem, size = 0x4, offset = 0x4, fixed_abs, tag = 'smem constant byte address 0x4 - core index']
  #allocation1 [shape = 'u32[144,128]{1,0:T(1,128)}', space=vmem, size = 0x12000, scoped, tag = 'internal scratch']
  %s0 = inlined_call_operand.hbm [shape: s32[8,8], index: 0, kind: input, shape index: {}]
  %s1 = inlined_call_operand.hbm [shape: f32[8,5], index: 1, kind: input, shape index: {}]
  %s2 = inlined_call_operand.hbm [shape: bf16[128,512], index: 2, kind: input, shape index: {}]
  %s3 = inlined_call_operand.hbm [shape: bf16[512,256], index: 3, kind: input, shape index: {}]
  %s4 = inlined_call_operand.hbm [shape: bf16[512,128], index: 4, kind: input, shape index: {}]
  %s5 = inlined_call_operand.hbm [shape: f32[1,1152], index: 5, kind: input, shape index: {}]
  %s6 = inlined_call_operand.vmem [shape: f32[8,128], index: 6, kind: output, shape index: {}]
  %s7 = sld [smem:[#allocation0]]
  $region58: #{classifier_forward.1} parent=0
    _
  %s9 = ssub.s32 1, %s7
  %s10 = scalar_select 0, %s9, %s7
  $region1: #{classifier_forward.1} parent=0
    #allocation2 [shape = 'u8[4096]{0}', space=vmem, size = 0x1000, scoped, tag = 'input window, operand 0, single buffered']
    #allocation3 [shape = 's32[1]{0}', space=sflag, size = 0x4, scoped, tag = 'scoped memory for classifier_forward.1']
    #allocation4 [shape = 'u8[4096]{0}', space=vmem, size = 0x1000, scoped, tag = 'input window, operand 1, single buffered']
    #allocation5 [shape = 's32[1]{0}', space=sflag, size = 0x4, scoped, tag = 'scoped memory for classifier_forward.1']
    #allocation6 [shape = 'u8[131072]{0}', space=vmem, size = 0x20000, scoped, tag = 'input window, operand 2, single buffered']
    #allocation7 [shape = 'u8[262144]{0}', space=vmem, size = 0x40000, scoped, tag = 'input window, operand 3, single buffered']
    #allocation8 [shape = 's32[1]{0}', space=sflag, size = 0x4, scoped, tag = 'scoped memory for classifier_forward.1']
    #allocation9 [shape = 'u8[131072]{0}', space=vmem, size = 0x20000, scoped, tag = 'input window, operand 4, single buffered']
    #allocation10 [shape = 'u8[4608]{0}', space=vmem, size = 0x1400, scoped, tag = 'input window, operand 5, single buffered']
    #allocation11 [shape = 's32[1]{0}', space=sflag, size = 0x4, scoped, tag = 'scoped memory for classifier_forward.1']
    %11 = vsyncpa [#allocation3], 0
    %12 = vsyncpa [#allocation5], 0
    %13 = vsyncpa [#allocation8], 0
    %14 = vsyncpa [#allocation11], 0
    // Predicated region
    $region2: #{classifier_forward.1} parent=1 // pred_check
      _
    $region3: #{classifier_forward.1} parent=1 // pred_check_branch
      %16 = sbr.rel (0) target = $region5
    $region4: #{classifier_forward.1} parent=1 // pred_region
      %s18 = ssub.s32 128, 128
      %19 = vsyncadd [#allocation3], %s18
      %s21 = sshll.u32 [#allocation2], 4
      %s22 = int_to_ptr.vmem [resolvable:$true] %s21
      %24 = dma.hbm_to_vmem [thread:$0]  %s0, 128, %s22, [#allocation3]
    $region5: #{classifier_forward.1} parent=1 // pred_fallthru
      _
    // Predicated region
    $region6: #{classifier_forward.1} parent=1 // pred_check
      _
    $region7: #{classifier_forward.1} parent=1 // pred_check_branch
      %26 = sbr.rel (0) target = $region9
    $region8: #{classifier_forward.1} parent=1 // pred_region
      %s28 = ssub.s32 128, 128
      %29 = vsyncadd [#allocation5], %s28
      %s31 = sshll.u32 [#allocation4], 4
      %s32 = int_to_ptr.vmem [resolvable:$true] %s31
      %34 = dma.hbm_to_vmem [thread:$0]  %s1, 128, %s32, [#allocation5]
    $region9: #{classifier_forward.1} parent=1 // pred_fallthru
      _
    // Predicated region
    $region10: #{classifier_forward.1} parent=1 // pred_check
      _
    $region11: #{classifier_forward.1} parent=1 // pred_check_branch
      %36 = sbr.rel (0) target = $region13
    $region12: #{classifier_forward.1} parent=1 // pred_region
      %s38 = ssub.s32 4096, 4096
      %39 = vsyncadd [#allocation5], %s38
      %s40 = sshll.u32 [#allocation6], 4
      %s41 = int_to_ptr.vmem [resolvable:$true] %s40
      %46 = dma.hbm_to_vmem [thread:$0]  %s2, 4096, %s41, [#allocation5], 256, 256, 16
    $region13: #{classifier_forward.1} parent=1 // pred_fallthru
      _
    // Predicated region
    $region14: #{classifier_forward.1} parent=1 // pred_check
      _
    $region15: #{classifier_forward.1} parent=1 // pred_check_branch
      %48 = sbr.rel (0) target = $region17
    $region16: #{classifier_forward.1} parent=1 // pred_region
      %s50 = ssub.s32 8192, 8192
      %51 = vsyncadd [#allocation8], %s50
      %s52 = sshll.u32 [#allocation7], 4
      %s53 = int_to_ptr.vmem [resolvable:$true] %s52
      %58 = dma.hbm_to_vmem [thread:$0]  %s3, 8192, %s53, [#allocation8], 128, 128, 8
    $region17: #{classifier_forward.1} parent=1 // pred_fallthru
      _
    // Predicated region
    $region18: #{classifier_forward.1} parent=1 // pred_check
      _
    $region19: #{classifier_forward.1} parent=1 // pred_check_branch
      %60 = sbr.rel (0) target = $region21
    $region20: #{classifier_forward.1} parent=1 // pred_region
      %s62 = ssub.s32 4096, 4096
      %63 = vsyncadd [#allocation8], %s62
      %s64 = sshll.u32 [#allocation9], 4
      %s65 = int_to_ptr.vmem [resolvable:$true] %s64
      %70 = dma.hbm_to_vmem [thread:$0]  %s4, 4096, %s65, [#allocation8], 64, 64, 4
    $region21: #{classifier_forward.1} parent=1 // pred_fallthru
      _
    // Predicated region
    $region22: #{classifier_forward.1} parent=1 // pred_check
      _
    $region23: #{classifier_forward.1} parent=1 // pred_check_branch
      %72 = sbr.rel (0) target = $region25
    $region24: #{classifier_forward.1} parent=1 // pred_region
      %s74 = ssub.s32 144, 144
      %75 = vsyncadd [#allocation11], %s74
      %s77 = sshll.u32 [#allocation10], 4
      %s78 = int_to_ptr.vmem [resolvable:$true] %s77
      %80 = dma.hbm_to_vmem [thread:$0]  %s5, 144, %s78, [#allocation11]
    $region25: #{classifier_forward.1} parent=1 // pred_fallthru
      _
    // Predicated region
    $region26: #{classifier_forward.1} parent=1 // pred_check
      _
    $region27: #{classifier_forward.1} parent=1 // pred_check_branch
      %82 = sbr.rel (0) target = $region29
    $region28: #{classifier_forward.1} parent=1 // pred_region
      %83 = dma.done [#allocation3], 128
    $region29: #{classifier_forward.1} parent=1 // pred_fallthru
      _
    // Predicated region
    $region30: #{classifier_forward.1} parent=1 // pred_check
      _
    $region31: #{classifier_forward.1} parent=1 // pred_check_branch
      %85 = sbr.rel (0) target = $region33
    $region32: #{classifier_forward.1} parent=1 // pred_region
      %86 = dma.done [#allocation5], 128
    $region33: #{classifier_forward.1} parent=1 // pred_fallthru
      _
    // Predicated region
    $region34: #{classifier_forward.1} parent=1 // pred_check
      _
    $region35: #{classifier_forward.1} parent=1 // pred_check_branch
      %88 = sbr.rel (0) target = $region37
    $region36: #{classifier_forward.1} parent=1 // pred_region
      %89 = dma.done [#allocation5], 4096
    $region37: #{classifier_forward.1} parent=1 // pred_fallthru
      _
    // Predicated region
    $region38: #{classifier_forward.1} parent=1 // pred_check
      _
    $region39: #{classifier_forward.1} parent=1 // pred_check_branch
      %91 = sbr.rel (0) target = $region41
    $region40: #{classifier_forward.1} parent=1 // pred_region
      %92 = dma.done [#allocation8], 8192
    $region41: #{classifier_forward.1} parent=1 // pred_fallthru
      _
    // Predicated region
    $region42: #{classifier_forward.1} parent=1 // pred_check
      _
    $region43: #{classifier_forward.1} parent=1 // pred_check_branch
      %94 = sbr.rel (0) target = $region45
    $region44: #{classifier_forward.1} parent=1 // pred_region
      %95 = dma.done [#allocation8], 4096
    $region45: #{classifier_forward.1} parent=1 // pred_fallthru
      _
    // Predicated region
    $region46: #{classifier_forward.1} parent=1 // pred_check
      _
    $region47: #{classifier_forward.1} parent=1 // pred_check_branch
      %97 = sbr.rel (0) target = $region49
    $region48: #{classifier_forward.1} parent=1 // pred_region
      %98 = dma.done [#allocation11], 144
    $region49: #{classifier_forward.1} parent=1 // pred_fallthru
      _
    %v100 = vld [vmem:[#allocation2] sm:$0xff]
    %v101 = vld [vmem:[#allocation4] sm:$0xff]
    %v102 = vlaneseq
    %v103 = vand.u32 %v102, 127
    %104 = vset.pattern.permute.xlu0 0
    %105 = vperm.xlu0 %104, %v100
    %v106 = vpop.permute.xlu0 %105
    %vm107 = vcmp.eq.s32.totalorder %v103, %v106
    %v108 = vadd.s32 %v100, 4
    %109 = vset.pattern.permute.xlu0 1
    %110 = vperm.xlu0 %109, %v108
    %v111 = vpop.permute.xlu0 %110
    %vm112 = vcmp.eq.s32.totalorder %v103, %v111
    %v113 = vadd.s32 %v100, 7
    %114 = vset.pattern.permute.xlu0 2
    %115 = vperm.xlu0 %114, %v113
    %v116 = vpop.permute.xlu0 %115
    %vm117 = vcmp.eq.s32.totalorder %v103, %v116
    %v118 = vadd.s32 %v100, 12
    %119 = vset.pattern.permute.xlu0 3
    %120 = vperm.xlu0 %119, %v118
    %v121 = vpop.permute.xlu0 %120
    %vm122 = vcmp.eq.s32.totalorder %v103, %v121
    %v123 = vadd.s32 %v100, 36
    %124 = vset.pattern.permute.xlu0 4
    %125 = vperm.xlu0 %124, %v123
    %v126 = vpop.permute.xlu0 %125
    %vm127 = vcmp.eq.s32.totalorder %v103, %v126
    %v128 = vadd.s32 %v100, 38
    %129 = vset.pattern.permute.xlu0 5
    %130 = vperm.xlu0 %129, %v128
    %v131 = vpop.permute.xlu0 %130
    %vm132 = vcmp.eq.s32.totalorder %v103, %v131
    %v133 = vadd.s32 %v100, 44
    %134 = vset.pattern.permute.xlu0 6
    %135 = vperm.xlu0 %134, %v133
    %v136 = vpop.permute.xlu0 %135
    %vm137 = vcmp.eq.s32.totalorder %v103, %v136
    %v138 = vadd.s32 %v100, 52
    %139 = vset.pattern.permute.xlu0 7
    %140 = vperm.xlu0 %139, %v138
    %v141 = vpop.permute.xlu0 %140
    %vm142 = vcmp.eq.s32.totalorder %v103, %v141
    %vm143 = vmor %vm107, %vm112
    %vm144 = vmor %vm117, %vm122
    %vm145 = vmor %vm127, %vm132
    %vm146 = vmor %vm137, %vm142
    %vm147 = vmor %vm143, %vm144
    %vm148 = vmor %vm145, %vm146
    %vm149 = vmor %vm147, %vm148
    %v150 = vsel %vm149, 1, 0
    %v151 = vcvt.s32.f32 %v150
    %vm152 = vcmp.eq.s32.totalorder %v103, 64
    %154 = vset.pattern.permute.xlu0 0
    %155 = vperm.xlu0 %154, %v101
    %v156 = vpop.permute.xlu0 %155
    %v158 = vsel %vm152, %v156, 0.0
    %vm159 = vcmp.eq.s32.totalorder %v103, 65
    %160 = vset.pattern.permute.xlu0 1
    %161 = vperm.xlu0 %160, %v101
    %v162 = vpop.permute.xlu0 %161
    %v164 = vsel %vm159, %v162, 0.0
    %vm165 = vcmp.eq.s32.totalorder %v103, 66
    %166 = vset.pattern.permute.xlu0 2
    %167 = vperm.xlu0 %166, %v101
    %v168 = vpop.permute.xlu0 %167
    %v170 = vsel %vm165, %v168, 0.0
    %vm171 = vcmp.eq.s32.totalorder %v103, 67
    %172 = vset.pattern.permute.xlu0 3
    %173 = vperm.xlu0 %172, %v101
    %v174 = vpop.permute.xlu0 %173
    %v176 = vsel %vm171, %v174, 0.0
    %vm177 = vcmp.eq.s32.totalorder %v103, 68
    %178 = vset.pattern.permute.xlu0 4
    %179 = vperm.xlu0 %178, %v101
    %v180 = vpop.permute.xlu0 %179
    %v182 = vsel %vm177, %v180, 0.0
    %v183 = vadd.f32 %v158, %v164
    %v184 = vadd.f32 %v170, %v176
    %v185 = vadd.f32 %v183, %v184
    %v186 = vadd.f32 %v185, %v182
    %v187 = vadd.f32 %v151, %v186
    %v188 = vpack.c.bf16 %v187, %v187
    %v189 = vld [vmem:[#allocation10] sm:$0xf]
    %v190 = vld [vmem:[#allocation10 + $0x4] sm:$0x3]
    %v191 = vld [vmem:[#allocation10 + $0x6] sm:$0x1]
    %v192 = vld [vmem:[#allocation10 + $0x7] sm:$0x1]
    %v193 = vld [vmem:[#allocation10 + $0x8] sm:$0x1]
    %v194 = vld [vmem:[#allocation6] sm:$0xff]
    %v195 = vld [vmem:[#allocation6 + $0x8] sm:$0xff]
    %v196 = vld [vmem:[#allocation6 + $0x10] sm:$0xff]
    %v197 = vld [vmem:[#allocation6 + $0x18] sm:$0xff]
    %v198 = vld [vmem:[#allocation6 + $0x20] sm:$0xff]
    %v199 = vld [vmem:[#allocation6 + $0x28] sm:$0xff]
    %v200 = vld [vmem:[#allocation6 + $0x30] sm:$0xff]
    %v201 = vld [vmem:[#allocation6 + $0x38] sm:$0xff]
    %v202 = vld [vmem:[#allocation6 + $0x40] sm:$0xff]
    %v203 = vld [vmem:[#allocation6 + $0x48] sm:$0xff]
    %v204 = vld [vmem:[#allocation6 + $0x50] sm:$0xff]
    %v205 = vld [vmem:[#allocation6 + $0x58] sm:$0xff]
    %v206 = vld [vmem:[#allocation6 + $0x60] sm:$0xff]
    %v207 = vld [vmem:[#allocation6 + $0x68] sm:$0xff]
    %v208 = vld [vmem:[#allocation6 + $0x70] sm:$0xff]
    %v209 = vld [vmem:[#allocation6 + $0x78] sm:$0xff]
    %v210 = vld [vmem:[#allocation6 + $0x80] sm:$0xff]
    %v211 = vld [vmem:[#allocation6 + $0x88] sm:$0xff]
    %v212 = vld [vmem:[#allocation6 + $0x90] sm:$0xff]
    %v213 = vld [vmem:[#allocation6 + $0x98] sm:$0xff]
    %v214 = vld [vmem:[#allocation6 + $0xa0] sm:$0xff]
    %v215 = vld [vmem:[#allocation6 + $0xa8] sm:$0xff]
    %v216 = vld [vmem:[#allocation6 + $0xb0] sm:$0xff]
    %v217 = vld [vmem:[#allocation6 + $0xb8] sm:$0xff]
    %v218 = vld [vmem:[#allocation6 + $0xc0] sm:$0xff]
    %v219 = vld [vmem:[#allocation6 + $0xc8] sm:$0xff]
    %v220 = vld [vmem:[#allocation6 + $0xd0] sm:$0xff]
    %v221 = vld [vmem:[#allocation6 + $0xd8] sm:$0xff]
    %v222 = vld [vmem:[#allocation6 + $0xe0] sm:$0xff]
    %v223 = vld [vmem:[#allocation6 + $0xe8] sm:$0xff]
    %v224 = vld [vmem:[#allocation6 + $0xf0] sm:$0xff]
    %v225 = vld [vmem:[#allocation6 + $0xf8] sm:$0xff]
    %v227 = vlaneseq
    %v228 = vshrl.u32 %v227, 7
    %v229 = vsub.s32 0, %v228
    %v230 = vrot.slane %v189, %v229
    %v231 = vlaneseq
    %v232 = vshrl.u32 %v231, 7
    %v233 = vsub.s32 1, %v232
    %v234 = vrot.slane %v189, %v233
    %v235 = vlaneseq
    %v236 = vshrl.u32 %v235, 7
    %v237 = vsub.s32 2, %v236
    %v238 = vrot.slane %v189, %v237
    %v239 = vlaneseq
    %v240 = vshrl.u32 %v239, 7
    %v241 = vsub.s32 3, %v240
    %v242 = vrot.slane %v189, %v241
    %v279 = vunpack.c.l.b16 %v194
    %v280 = vunpack.c.h.b16 %v194
    %v281 = vunpack.c.l.b16 %v195
    %v282 = vunpack.c.h.b16 %v195
    %v283 = vunpack.c.l.b16 %v196
    %v284 = vunpack.c.h.b16 %v196
    %v285 = vunpack.c.l.b16 %v197
    %v286 = vunpack.c.h.b16 %v197
    %v287 = vunpack.c.l.b16 %v198
    %v288 = vunpack.c.h.b16 %v198
    %v289 = vunpack.c.l.b16 %v199
    %v290 = vunpack.c.h.b16 %v199
    %v291 = vunpack.c.l.b16 %v200
    %v292 = vunpack.c.h.b16 %v200
    %v293 = vunpack.c.l.b16 %v201
    %v294 = vunpack.c.h.b16 %v201
    %v295 = vunpack.c.l.b16 %v202
    %v296 = vunpack.c.h.b16 %v202
    %v297 = vunpack.c.l.b16 %v203
    %v298 = vunpack.c.h.b16 %v203
    %v299 = vunpack.c.l.b16 %v204
    %v300 = vunpack.c.h.b16 %v204
    %v301 = vunpack.c.l.b16 %v205
    %v302 = vunpack.c.h.b16 %v205
    %v303 = vunpack.c.l.b16 %v206
    %v304 = vunpack.c.h.b16 %v206
    %v305 = vunpack.c.l.b16 %v207
    %v306 = vunpack.c.h.b16 %v207
    %v307 = vunpack.c.l.b16 %v208
    %v308 = vunpack.c.h.b16 %v208
    %v309 = vunpack.c.l.b16 %v209
    %v310 = vunpack.c.h.b16 %v209
    %v311 = vunpack.c.l.b16 %v210
    %v312 = vunpack.c.h.b16 %v210
    %v313 = vunpack.c.l.b16 %v211
    %v314 = vunpack.c.h.b16 %v211
    %v315 = vunpack.c.l.b16 %v212
    %v316 = vunpack.c.h.b16 %v212
    %v317 = vunpack.c.l.b16 %v213
    %v318 = vunpack.c.h.b16 %v213
    %v319 = vunpack.c.l.b16 %v214
    %v320 = vunpack.c.h.b16 %v214
    %v321 = vunpack.c.l.b16 %v215
    %v322 = vunpack.c.h.b16 %v215
    %v323 = vunpack.c.l.b16 %v216
    %v324 = vunpack.c.h.b16 %v216
    %v325 = vunpack.c.l.b16 %v217
    %v326 = vunpack.c.h.b16 %v217
    %v327 = vunpack.c.l.b16 %v218
    %v328 = vunpack.c.h.b16 %v218
    %v329 = vunpack.c.l.b16 %v219
    %v330 = vunpack.c.h.b16 %v219
    %v331 = vunpack.c.l.b16 %v220
    %v332 = vunpack.c.h.b16 %v220
    %v333 = vunpack.c.l.b16 %v221
    %v334 = vunpack.c.h.b16 %v221
    %v335 = vunpack.c.l.b16 %v222
    %v336 = vunpack.c.h.b16 %v222
    %v337 = vunpack.c.l.b16 %v223
    %v338 = vunpack.c.h.b16 %v223
    %v339 = vunpack.c.l.b16 %v224
    %v340 = vunpack.c.h.b16 %v224
    %v341 = vunpack.c.l.b16 %v225
    %v342 = vunpack.c.h.b16 %v225
    %v343 = vpack.c.b16 %v283, %v279
    %v344 = vpack.c.b16 %v284, %v280
    %v345 = vpack.c.b16 %v285, %v281
    %v346 = vpack.c.b16 %v286, %v282
    %v347 = vpack.c.b16 %v291, %v287
    %v348 = vpack.c.b16 %v292, %v288
    %v349 = vpack.c.b16 %v293, %v289
    %v350 = vpack.c.b16 %v294, %v290
    %v351 = vpack.c.b16 %v299, %v295
    %v352 = vpack.c.b16 %v300, %v296
    %v353 = vpack.c.b16 %v301, %v297
    %v354 = vpack.c.b16 %v302, %v298
    %v355 = vpack.c.b16 %v307, %v303
    %v356 = vpack.c.b16 %v308, %v304
    %v357 = vpack.c.b16 %v309, %v305
    %v358 = vpack.c.b16 %v310, %v306
    %v359 = vpack.c.b16 %v315, %v311
    %v360 = vpack.c.b16 %v316, %v312
    %v361 = vpack.c.b16 %v317, %v313
    %v362 = vpack.c.b16 %v318, %v314
    %v363 = vpack.c.b16 %v323, %v319
    %v364 = vpack.c.b16 %v324, %v320
    %v365 = vpack.c.b16 %v325, %v321
    %v366 = vpack.c.b16 %v326, %v322
    %v367 = vpack.c.b16 %v331, %v327
    %v368 = vpack.c.b16 %v332, %v328
    %v369 = vpack.c.b16 %v333, %v329
    %v370 = vpack.c.b16 %v334, %v330
    %v371 = vpack.c.b16 %v339, %v335
    %v372 = vpack.c.b16 %v340, %v336
    %v373 = vpack.c.b16 %v341, %v337
    %v374 = vpack.c.b16 %v342, %v338
    %407 = vmatprep.subr.bf16.mxu0 %v344
    %408 = vmatpush1.bf16.msra.mxu0 %v343
    %409 = vmatprep.subr.bf16.mxu0 %v348
    %410 = vmatpush1.bf16.msra.mxu0 %v347
    %411 = vmatprep.subr.bf16.mxu0 %v352
    %412 = vmatpush1.bf16.msra.mxu0 %v351
    %413 = vmatprep.subr.bf16.mxu0 %v356
    %414 = vmatpush1.bf16.msra.mxu0 %v355
    %415 = vmatprep.subr.bf16.mxu0 %v360
    %416 = vmatpush1.bf16.msra.mxu0 %v359
    %417 = vmatprep.subr.bf16.mxu0 %v364
    %418 = vmatpush1.bf16.msra.mxu0 %v363
    %419 = vmatprep.subr.bf16.mxu0 %v368
    %420 = vmatpush1.bf16.msra.mxu0 %v367
    %421 = vmatprep.subr.bf16.mxu0 %v372
    %422 = vmatpush1.bf16.msra.mxu0 %v371
    %423 = vmatprep.subr.bf16.mxu0 0
    %424 = vmatpush1.bf16.msra.mxu0 0
    %425 = vmatprep.subr.bf16.mxu0 0
    %426 = vmatpush1.bf16.msra.mxu0 0
    %427 = vmatprep.subr.bf16.mxu0 0
    %428 = vmatpush1.bf16.msra.mxu0 0
    %429 = vmatprep.subr.bf16.mxu0 0
    %430 = vmatpush1.bf16.msra.mxu0 0
    %431 = vmatprep.subr.bf16.mxu0 0
    %432 = vmatpush1.bf16.msra.mxu0 0
    %433 = vmatprep.subr.bf16.mxu0 0
    %434 = vmatpush1.bf16.msra.mxu0 0
    %435 = vmatprep.subr.bf16.mxu0 0
    %436 = vmatpush1.bf16.msra.mxu0 0
    %437 = vmatprep.subr.bf16.mxu0 0
    %438 = vmatpush1.bf16.msra.mxu0 0
    %439 = vmatprep.mubr.bf16.mxu0 0
    %440 = vmatmul.mubr.bf16.gmra.mrb[0].mxu0 %v188
    %v441 = vpop.f32.mrb[0].mxu0
    %v442 = vadd.f32 %v230, %v441
    %v443 = vpop.f32.mrb[0].mxu0
    %v444 = vadd.f32 %v234, %v443
    %v445 = vpop.f32.mrb[0].mxu0
    %v446 = vpop.f32.mrb[0].mxu0
    %447 = vdwg.mxu0
    %448 = vmatprep.subr.bf16.mxu0 %v346
    %449 = vmatpush1.bf16.msra.mxu0 %v345
    %450 = vmatprep.subr.bf16.mxu0 %v350
    %451 = vmatpush1.bf16.msra.mxu0 %v349
    %452 = vmatprep.subr.bf16.mxu0 %v354
    %453 = vmatpush1.bf16.msra.mxu0 %v353
    %454 = vmatprep.subr.bf16.mxu0 %v358
    %455 = vmatpush1.bf16.msra.mxu0 %v357
    %456 = vmatprep.subr.bf16.mxu0 %v362
    %457 = vmatpush1.bf16.msra.mxu0 %v361
    %458 = vmatprep.subr.bf16.mxu0 %v366
    %459 = vmatpush1.bf16.msra.mxu0 %v365
    %460 = vmatprep.subr.bf16.mxu0 %v370
    %461 = vmatpush1.bf16.msra.mxu0 %v369
    %462 = vmatprep.subr.bf16.mxu0 %v374
    %463 = vmatpush1.bf16.msra.mxu0 %v373
    %464 = vmatprep.subr.bf16.mxu0 0
    %465 = vmatpush1.bf16.msra.mxu0 0
    %466 = vmatprep.subr.bf16.mxu0 0
    %467 = vmatpush1.bf16.msra.mxu0 0
    %468 = vmatprep.subr.bf16.mxu0 0
    %469 = vmatpush1.bf16.msra.mxu0 0
    %470 = vmatprep.subr.bf16.mxu0 0
    %471 = vmatpush1.bf16.msra.mxu0 0
    %472 = vmatprep.subr.bf16.mxu0 0
    %473 = vmatpush1.bf16.msra.mxu0 0
    %474 = vmatprep.subr.bf16.mxu0 0
    %475 = vmatpush1.bf16.msra.mxu0 0
    %476 = vmatprep.subr.bf16.mxu0 0
    %477 = vmatpush1.bf16.msra.mxu0 0
    %478 = vmatprep.subr.bf16.mxu0 0
    %479 = vmatpush1.bf16.msra.mxu0 0
    %480 = vmatprep.mubr.bf16.mxu0 0
    %481 = vmatmul.mubr.bf16.gmra.mrb[0].mxu0 %v188
    %v482 = vpop.f32.mrb[0].mxu0
    %v483 = vadd.f32 %v238, %v482
    %v484 = vpop.f32.mrb[0].mxu0
    %v485 = vadd.f32 %v242, %v484
    %v486 = vpop.f32.mrb[0].mxu0
    %v487 = vpop.f32.mrb[0].mxu0
    %488 = vdwg.mxu0
    %vm489 = vcmp.gt.f32.partialorder %v442, 0.0
    %vm490 = vcmp.gt.f32.partialorder %v444, 0.0
    %vm491 = vcmp.gt.f32.partialorder %v483, 0.0
    %vm492 = vcmp.gt.f32.partialorder %v485, 0.0
    %v493 = vmul.f32 %v442, 0.01
    %v494 = vmul.f32 %v444, 0.01
    %v495 = vmul.f32 %v483, 0.01
    %v496 = vmul.f32 %v485, 0.01
    %v497 = vsel %vm489, %v442, %v493
    %v498 = vsel %vm490, %v444, %v494
    %v499 = vsel %vm491, %v483, %v495
    %v500 = vsel %vm492, %v485, %v496
    %v501 = vpack.c.bf16 %v497, %v497
    %v502 = vpack.c.bf16 %v498, %v498
    %v503 = vpack.c.bf16 %v499, %v499
    %v504 = vpack.c.bf16 %v500, %v500
    %v505 = vld [vmem:[#allocation7] sm:$0xff]
    %v506 = vld [vmem:[#allocation7 + $0x8] sm:$0xff]
    %v507 = vld [vmem:[#allocation7 + $0x10] sm:$0xff]
    %v508 = vld [vmem:[#allocation7 + $0x18] sm:$0xff]
    %v509 = vld [vmem:[#allocation7 + $0x20] sm:$0xff]
    %v510 = vld [vmem:[#allocation7 + $0x28] sm:$0xff]
    %v511 = vld [vmem:[#allocation7 + $0x30] sm:$0xff]
    %v512 = vld [vmem:[#allocation7 + $0x38] sm:$0xff]
    %v513 = vld [vmem:[#allocation7 + $0x40] sm:$0xff]
    %v514 = vld [vmem:[#allocation7 + $0x48] sm:$0xff]
    %v515 = vld [vmem:[#allocation7 + $0x50] sm:$0xff]
    %v516 = vld [vmem:[#allocation7 + $0x58] sm:$0xff]
    %v517 = vld [vmem:[#allocation7 + $0x60] sm:$0xff]
    %v518 = vld [vmem:[#allocation7 + $0x68] sm:$0xff]
    %v519 = vld [vmem:[#allocation7 + $0x70] sm:$0xff]
    %v520 = vld [vmem:[#allocation7 + $0x78] sm:$0xff]
    %v521 = vld [vmem:[#allocation7 + $0x80] sm:$0xff]
    %v522 = vld [vmem:[#allocation7 + $0x88] sm:$0xff]
    %v523 = vld [vmem:[#allocation7 + $0x90] sm:$0xff]
    %v524 = vld [vmem:[#allocation7 + $0x98] sm:$0xff]
    %v525 = vld [vmem:[#allocation7 + $0xa0] sm:$0xff]
    %v526 = vld [vmem:[#allocation7 + $0xa8] sm:$0xff]
    %v527 = vld [vmem:[#allocation7 + $0xb0] sm:$0xff]
    %v528 = vld [vmem:[#allocation7 + $0xb8] sm:$0xff]
    %v529 = vld [vmem:[#allocation7 + $0xc0] sm:$0xff]
    %v530 = vld [vmem:[#allocation7 + $0xc8] sm:$0xff]
    %v531 = vld [vmem:[#allocation7 + $0xd0] sm:$0xff]
    %v532 = vld [vmem:[#allocation7 + $0xd8] sm:$0xff]
    %v533 = vld [vmem:[#allocation7 + $0xe0] sm:$0xff]
    %v534 = vld [vmem:[#allocation7 + $0xe8] sm:$0xff]
    %v535 = vld [vmem:[#allocation7 + $0xf0] sm:$0xff]
    %v536 = vld [vmem:[#allocation7 + $0xf8] sm:$0xff]
    %v537 = vld [vmem:[#allocation7 + $0x100] sm:$0xff]
    %v538 = vld [vmem:[#allocation7 + $0x108] sm:$0xff]
    %v539 = vld [vmem:[#allocation7 + $0x110] sm:$0xff]
    %v540 = vld [vmem:[#allocation7 + $0x118] sm:$0xff]
    %v541 = vld [vmem:[#allocation7 + $0x120] sm:$0xff]
    %v542 = vld [vmem:[#allocation7 + $0x128] sm:$0xff]
    %v543 = vld [vmem:[#allocation7 + $0x130] sm:$0xff]
    %v544 = vld [vmem:[#allocation7 + $0x138] sm:$0xff]
    %v545 = vld [vmem:[#allocation7 + $0x140] sm:$0xff]
    %v546 = vld [vmem:[#allocation7 + $0x148] sm:$0xff]
    %v547 = vld [vmem:[#allocation7 + $0x150] sm:$0xff]
    %v548 = vld [vmem:[#allocation7 + $0x158] sm:$0xff]
    %v549 = vld [vmem:[#allocation7 + $0x160] sm:$0xff]
    %v550 = vld [vmem:[#allocation7 + $0x168] sm:$0xff]
    %v551 = vld [vmem:[#allocation7 + $0x170] sm:$0xff]
    %v552 = vld [vmem:[#allocation7 + $0x178] sm:$0xff]
    %v553 = vld [vmem:[#allocation7 + $0x180] sm:$0xff]
    %v554 = vld [vmem:[#allocation7 + $0x188] sm:$0xff]
    %v555 = vld [vmem:[#allocation7 + $0x190] sm:$0xff]
    %v556 = vld [vmem:[#allocation7 + $0x198] sm:$0xff]
    %v557 = vld [vmem:[#allocation7 + $0x1a0] sm:$0xff]
    %v558 = vld [vmem:[#allocation7 + $0x1a8] sm:$0xff]
    %v559 = vld [vmem:[#allocation7 + $0x1b0] sm:$0xff]
    %v560 = vld [vmem:[#allocation7 + $0x1b8] sm:$0xff]
    %v561 = vld [vmem:[#allocation7 + $0x1c0] sm:$0xff]
    %v562 = vld [vmem:[#allocation7 + $0x1c8] sm:$0xff]
    %v563 = vld [vmem:[#allocation7 + $0x1d0] sm:$0xff]
    %v564 = vld [vmem:[#allocation7 + $0x1d8] sm:$0xff]
    %v565 = vld [vmem:[#allocation7 + $0x1e0] sm:$0xff]
    %v566 = vld [vmem:[#allocation7 + $0x1e8] sm:$0xff]
    %v567 = vld [vmem:[#allocation7 + $0x1f0] sm:$0xff]
    %v568 = vld [vmem:[#allocation7 + $0x1f8] sm:$0xff]
    %v570 = vlaneseq
    %v571 = vshrl.u32 %v570, 7
    %v572 = vsub.s32 0, %v571
    %v573 = vrot.slane %v190, %v572
    %v574 = vlaneseq
    %v575 = vshrl.u32 %v574, 7
    %v576 = vsub.s32 1, %v575
    %v577 = vrot.slane %v190, %v576
    %v644 = vunpack.c.l.b16 %v505
    %v645 = vunpack.c.h.b16 %v505
    %v646 = vunpack.c.l.b16 %v506
    %v647 = vunpack.c.h.b16 %v506
    %v648 = vunpack.c.l.b16 %v507
    %v649 = vunpack.c.h.b16 %v507
    %v650 = vunpack.c.l.b16 %v508
    %v651 = vunpack.c.h.b16 %v508
    %v652 = vunpack.c.l.b16 %v509
    %v653 = vunpack.c.h.b16 %v509
    %v654 = vunpack.c.l.b16 %v510
    %v655 = vunpack.c.h.b16 %v510
    %v656 = vunpack.c.l.b16 %v511
    %v657 = vunpack.c.h.b16 %v511
    %v658 = vunpack.c.l.b16 %v512
    %v659 = vunpack.c.h.b16 %v512
    %v660 = vunpack.c.l.b16 %v513
    %v661 = vunpack.c.h.b16 %v513
    %v662 = vunpack.c.l.b16 %v514
    %v663 = vunpack.c.h.b16 %v514
    %v664 = vunpack.c.l.b16 %v515
    %v665 = vunpack.c.h.b16 %v515
    %v666 = vunpack.c.l.b16 %v516
    %v667 = vunpack.c.h.b16 %v516
    %v668 = vunpack.c.l.b16 %v517
    %v669 = vunpack.c.h.b16 %v517
    %v670 = vunpack.c.l.b16 %v518
    %v671 = vunpack.c.h.b16 %v518
    %v672 = vunpack.c.l.b16 %v519
    %v673 = vunpack.c.h.b16 %v519
    %v674 = vunpack.c.l.b16 %v520
    %v675 = vunpack.c.h.b16 %v520
    %v676 = vunpack.c.l.b16 %v521
    %v677 = vunpack.c.h.b16 %v521
    %v678 = vunpack.c.l.b16 %v522
    %v679 = vunpack.c.h.b16 %v522
    %v680 = vunpack.c.l.b16 %v523
    %v681 = vunpack.c.h.b16 %v523
    %v682 = vunpack.c.l.b16 %v524
    %v683 = vunpack.c.h.b16 %v524
    %v684 = vunpack.c.l.b16 %v525
    %v685 = vunpack.c.h.b16 %v525
    %v686 = vunpack.c.l.b16 %v526
    %v687 = vunpack.c.h.b16 %v526
    %v688 = vunpack.c.l.b16 %v527
    %v689 = vunpack.c.h.b16 %v527
    %v690 = vunpack.c.l.b16 %v528
    %v691 = vunpack.c.h.b16 %v528
    %v692 = vunpack.c.l.b16 %v529
    %v693 = vunpack.c.h.b16 %v529
    %v694 = vunpack.c.l.b16 %v530
    %v695 = vunpack.c.h.b16 %v530
    %v696 = vunpack.c.l.b16 %v531
    %v697 = vunpack.c.h.b16 %v531
    %v698 = vunpack.c.l.b16 %v532
    %v699 = vunpack.c.h.b16 %v532
    %v700 = vunpack.c.l.b16 %v533
    %v701 = vunpack.c.h.b16 %v533
    %v702 = vunpack.c.l.b16 %v534
    %v703 = vunpack.c.h.b16 %v534
    %v704 = vunpack.c.l.b16 %v535
    %v705 = vunpack.c.h.b16 %v535
    %v706 = vunpack.c.l.b16 %v536
    %v707 = vunpack.c.h.b16 %v536
    %v708 = vunpack.c.l.b16 %v537
    %v709 = vunpack.c.h.b16 %v537
    %v710 = vunpack.c.l.b16 %v538
    %v711 = vunpack.c.h.b16 %v538
    %v712 = vunpack.c.l.b16 %v539
    %v713 = vunpack.c.h.b16 %v539
    %v714 = vunpack.c.l.b16 %v540
    %v715 = vunpack.c.h.b16 %v540
    %v716 = vunpack.c.l.b16 %v541
    %v717 = vunpack.c.h.b16 %v541
    %v718 = vunpack.c.l.b16 %v542
    %v719 = vunpack.c.h.b16 %v542
    %v720 = vunpack.c.l.b16 %v543
    %v721 = vunpack.c.h.b16 %v543
    %v722 = vunpack.c.l.b16 %v544
    %v723 = vunpack.c.h.b16 %v544
    %v724 = vunpack.c.l.b16 %v545
    %v725 = vunpack.c.h.b16 %v545
    %v726 = vunpack.c.l.b16 %v546
    %v727 = vunpack.c.h.b16 %v546
    %v728 = vunpack.c.l.b16 %v547
    %v729 = vunpack.c.h.b16 %v547
    %v730 = vunpack.c.l.b16 %v548
    %v731 = vunpack.c.h.b16 %v548
    %v732 = vunpack.c.l.b16 %v549
    %v733 = vunpack.c.h.b16 %v549
    %v734 = vunpack.c.l.b16 %v550
    %v735 = vunpack.c.h.b16 %v550
    %v736 = vunpack.c.l.b16 %v551
    %v737 = vunpack.c.h.b16 %v551
    %v738 = vunpack.c.l.b16 %v552
    %v739 = vunpack.c.h.b16 %v552
    %v740 = vunpack.c.l.b16 %v553
    %v741 = vunpack.c.h.b16 %v553
    %v742 = vunpack.c.l.b16 %v554
    %v743 = vunpack.c.h.b16 %v554
    %v744 = vunpack.c.l.b16 %v555
    %v745 = vunpack.c.h.b16 %v555
    %v746 = vunpack.c.l.b16 %v556
    %v747 = vunpack.c.h.b16 %v556
    %v748 = vunpack.c.l.b16 %v557
    %v749 = vunpack.c.h.b16 %v557
    %v750 = vunpack.c.l.b16 %v558
    %v751 = vunpack.c.h.b16 %v558
    %v752 = vunpack.c.l.b16 %v559
    %v753 = vunpack.c.h.b16 %v559
    %v754 = vunpack.c.l.b16 %v560
    %v755 = vunpack.c.h.b16 %v560
    %v756 = vunpack.c.l.b16 %v561
    %v757 = vunpack.c.h.b16 %v561
    %v758 = vunpack.c.l.b16 %v562
    %v759 = vunpack.c.h.b16 %v562
    %v760 = vunpack.c.l.b16 %v563
    %v761 = vunpack.c.h.b16 %v563
    %v762 = vunpack.c.l.b16 %v564
    %v763 = vunpack.c.h.b16 %v564
    %v764 = vunpack.c.l.b16 %v565
    %v765 = vunpack.c.h.b16 %v565
    %v766 = vunpack.c.l.b16 %v566
    %v767 = vunpack.c.h.b16 %v566
    %v768 = vunpack.c.l.b16 %v567
    %v769 = vunpack.c.h.b16 %v567
    %v770 = vunpack.c.l.b16 %v568
    %v771 = vunpack.c.h.b16 %v568
    %v772 = vpack.c.b16 %v646, %v644
    %v773 = vpack.c.b16 %v647, %v645
    %v774 = vpack.c.b16 %v650, %v648
    %v775 = vpack.c.b16 %v651, %v649
    %v776 = vpack.c.b16 %v654, %v652
    %v777 = vpack.c.b16 %v655, %v653
    %v778 = vpack.c.b16 %v658, %v656
    %v779 = vpack.c.b16 %v659, %v657
    %v780 = vpack.c.b16 %v662, %v660
    %v781 = vpack.c.b16 %v663, %v661
    %v782 = vpack.c.b16 %v666, %v664
    %v783 = vpack.c.b16 %v667, %v665
    %v784 = vpack.c.b16 %v670, %v668
    %v785 = vpack.c.b16 %v671, %v669
    %v786 = vpack.c.b16 %v674, %v672
    %v787 = vpack.c.b16 %v675, %v673
    %v788 = vpack.c.b16 %v678, %v676
    %v789 = vpack.c.b16 %v679, %v677
    %v790 = vpack.c.b16 %v682, %v680
    %v791 = vpack.c.b16 %v683, %v681
    %v792 = vpack.c.b16 %v686, %v684
    %v793 = vpack.c.b16 %v687, %v685
    %v794 = vpack.c.b16 %v690, %v688
    %v795 = vpack.c.b16 %v691, %v689
    %v796 = vpack.c.b16 %v694, %v692
    %v797 = vpack.c.b16 %v695, %v693
    %v798 = vpack.c.b16 %v698, %v696
    %v799 = vpack.c.b16 %v699, %v697
    %v800 = vpack.c.b16 %v702, %v700
    %v801 = vpack.c.b16 %v703, %v701
    %v802 = vpack.c.b16 %v706, %v704
    %v803 = vpack.c.b16 %v707, %v705
    %v804 = vpack.c.b16 %v710, %v708
    %v805 = vpack.c.b16 %v711, %v709
    %v806 = vpack.c.b16 %v714, %v712
    %v807 = vpack.c.b16 %v715, %v713
    %v808 = vpack.c.b16 %v718, %v716
    %v809 = vpack.c.b16 %v719, %v717
    %v810 = vpack.c.b16 %v722, %v720
    %v811 = vpack.c.b16 %v723, %v721
    %v812 = vpack.c.b16 %v726, %v724
    %v813 = vpack.c.b16 %v727, %v725
    %v814 = vpack.c.b16 %v730, %v728
    %v815 = vpack.c.b16 %v731, %v729
    %v816 = vpack.c.b16 %v734, %v732
    %v817 = vpack.c.b16 %v735, %v733
    %v818 = vpack.c.b16 %v738, %v736
    %v819 = vpack.c.b16 %v739, %v737
    %v820 = vpack.c.b16 %v742, %v740
    %v821 = vpack.c.b16 %v743, %v741
    %v822 = vpack.c.b16 %v746, %v744
    %v823 = vpack.c.b16 %v747, %v745
    %v824 = vpack.c.b16 %v750, %v748
    %v825 = vpack.c.b16 %v751, %v749
    %v826 = vpack.c.b16 %v754, %v752
    %v827 = vpack.c.b16 %v755, %v753
    %v828 = vpack.c.b16 %v758, %v756
    %v829 = vpack.c.b16 %v759, %v757
    %v830 = vpack.c.b16 %v762, %v760
    %v831 = vpack.c.b16 %v763, %v761
    %v832 = vpack.c.b16 %v766, %v764
    %v833 = vpack.c.b16 %v767, %v765
    %v834 = vpack.c.b16 %v770, %v768
    %v835 = vpack.c.b16 %v771, %v769
    %900 = vmatprep.subr.bf16.mxu0 %v773
    %901 = vmatpush1.bf16.msra.mxu0 %v772
    %902 = vmatprep.subr.bf16.mxu0 %v775
    %903 = vmatpush1.bf16.msra.mxu0 %v774
    %904 = vmatprep.subr.bf16.mxu0 %v777
    %905 = vmatpush1.bf16.msra.mxu0 %v776
    %906 = vmatprep.subr.bf16.mxu0 %v779
    %907 = vmatpush1.bf16.msra.mxu0 %v778
    %908 = vmatprep.subr.bf16.mxu0 %v781
    %909 = vmatpush1.bf16.msra.mxu0 %v780
    %910 = vmatprep.subr.bf16.mxu0 %v783
    %911 = vmatpush1.bf16.msra.mxu0 %v782
    %912 = vmatprep.subr.bf16.mxu0 %v785
    %913 = vmatpush1.bf16.msra.mxu0 %v784
    %914 = vmatprep.subr.bf16.mxu0 %v787
    %915 = vmatpush1.bf16.msra.mxu0 %v786
    %916 = vmatprep.subr.bf16.mxu0 %v789
    %917 = vmatpush1.bf16.msra.mxu0 %v788
    %918 = vmatprep.subr.bf16.mxu0 %v791
    %919 = vmatpush1.bf16.msra.mxu0 %v790
    %920 = vmatprep.subr.bf16.mxu0 %v793
    %921 = vmatpush1.bf16.msra.mxu0 %v792
    %922 = vmatprep.subr.bf16.mxu0 %v795
    %923 = vmatpush1.bf16.msra.mxu0 %v794
    %924 = vmatprep.subr.bf16.mxu0 %v797
    %925 = vmatpush1.bf16.msra.mxu0 %v796
    %926 = vmatprep.subr.bf16.mxu0 %v799
    %927 = vmatpush1.bf16.msra.mxu0 %v798
    %928 = vmatprep.subr.bf16.mxu0 %v801
    %929 = vmatpush1.bf16.msra.mxu0 %v800
    %930 = vmatprep.subr.bf16.mxu0 %v803
    %931 = vmatpush1.bf16.msra.mxu0 %v802
    %932 = vmatprep.mubr.bf16.mxu0 %v502
    %933 = vmatmul.mubr.bf16.gmra.mrb[0].mxu0 %v501
    %v934 = vpop.f32.mrb[0].mxu0
    %v935 = vadd.f32 %v573, %v934
    %v936 = vpop.f32.mrb[0].mxu0
    %v937 = vadd.f32 %v577, %v936
    %v938 = vpop.f32.mrb[0].mxu0
    %v939 = vpop.f32.mrb[0].mxu0
    %940 = vdwg.mxu0
    %941 = vmatprep.subr.bf16.mxu0 %v805
    %942 = vmatpush1.bf16.msra.mxu0 %v804
    %943 = vmatprep.subr.bf16.mxu0 %v807
    %944 = vmatpush1.bf16.msra.mxu0 %v806
    %945 = vmatprep.subr.bf16.mxu0 %v809
    %946 = vmatpush1.bf16.msra.mxu0 %v808
    %947 = vmatprep.subr.bf16.mxu0 %v811
    %948 = vmatpush1.bf16.msra.mxu0 %v810
    %949 = vmatprep.subr.bf16.mxu0 %v813
    %950 = vmatpush1.bf16.msra.mxu0 %v812
    %951 = vmatprep.subr.bf16.mxu0 %v815
    %952 = vmatpush1.bf16.msra.mxu0 %v814
    %953 = vmatprep.subr.bf16.mxu0 %v817
    %954 = vmatpush1.bf16.msra.mxu0 %v816
    %955 = vmatprep.subr.bf16.mxu0 %v819
    %956 = vmatpush1.bf16.msra.mxu0 %v818
    %957 = vmatprep.subr.bf16.mxu0 %v821
    %958 = vmatpush1.bf16.msra.mxu0 %v820
    %959 = vmatprep.subr.bf16.mxu0 %v823
    %960 = vmatpush1.bf16.msra.mxu0 %v822
    %961 = vmatprep.subr.bf16.mxu0 %v825
    %962 = vmatpush1.bf16.msra.mxu0 %v824
    %963 = vmatprep.subr.bf16.mxu0 %v827
    %964 = vmatpush1.bf16.msra.mxu0 %v826
    %965 = vmatprep.subr.bf16.mxu0 %v829
    %966 = vmatpush1.bf16.msra.mxu0 %v828
    %967 = vmatprep.subr.bf16.mxu0 %v831
    %968 = vmatpush1.bf16.msra.mxu0 %v830
    %969 = vmatprep.subr.bf16.mxu0 %v833
    %970 = vmatpush1.bf16.msra.mxu0 %v832
    %971 = vmatprep.subr.bf16.mxu0 %v835
    %972 = vmatpush1.bf16.msra.mxu0 %v834
    %973 = vmatprep.mubr.bf16.mxu0 %v504
    %974 = vmatmul.mubr.bf16.gmra.mrb[0].mxu0 %v503
    %v975 = vpop.f32.mrb[0].mxu0
    %v976 = vadd.f32 %v935, %v975
    %v977 = vpop.f32.mrb[0].mxu0
    %v978 = vadd.f32 %v937, %v977
    %v979 = vpop.f32.mrb[0].mxu0
    %v980 = vpop.f32.mrb[0].mxu0
    %981 = vdwg.mxu0
    %vm982 = vcmp.gt.f32.partialorder %v976, 0.0
    %vm983 = vcmp.gt.f32.partialorder %v978, 0.0
    %v984 = vmul.f32 %v976, 0.01
    %v985 = vmul.f32 %v978, 0.01
    %v986 = vsel %vm982, %v976, %v984
    %v987 = vsel %vm983, %v978, %v985
    %v988 = vpack.c.bf16 %v986, %v986
    %v989 = vpack.c.bf16 %v987, %v987
    %v990 = vld [vmem:[#allocation9] sm:$0xf]
    %v991 = vld [vmem:[#allocation9 + $0x4] sm:$0xf]
    %v992 = vld [vmem:[#allocation9 + $0x8] sm:$0xf]
    %v993 = vld [vmem:[#allocation9 + $0xc] sm:$0xf]
    %v994 = vld [vmem:[#allocation9 + $0x10] sm:$0xf]
    %v995 = vld [vmem:[#allocation9 + $0x14] sm:$0xf]
    %v996 = vld [vmem:[#allocation9 + $0x18] sm:$0xf]
    %v997 = vld [vmem:[#allocation9 + $0x1c] sm:$0xf]
    %v998 = vld [vmem:[#allocation9 + $0x20] sm:$0xf]
    %v999 = vld [vmem:[#allocation9 + $0x24] sm:$0xf]
    %v1000 = vld [vmem:[#allocation9 + $0x28] sm:$0xf]
    %v1001 = vld [vmem:[#allocation9 + $0x2c] sm:$0xf]
    %v1002 = vld [vmem:[#allocation9 + $0x30] sm:$0xf]
    %v1003 = vld [vmem:[#allocation9 + $0x34] sm:$0xf]
    %v1004 = vld [vmem:[#allocation9 + $0x38] sm:$0xf]
    %v1005 = vld [vmem:[#allocation9 + $0x3c] sm:$0xf]
    %v1006 = vld [vmem:[#allocation9 + $0x40] sm:$0xf]
    %v1007 = vld [vmem:[#allocation9 + $0x44] sm:$0xf]
    %v1008 = vld [vmem:[#allocation9 + $0x48] sm:$0xf]
    %v1009 = vld [vmem:[#allocation9 + $0x4c] sm:$0xf]
    %v1010 = vld [vmem:[#allocation9 + $0x50] sm:$0xf]
    %v1011 = vld [vmem:[#allocation9 + $0x54] sm:$0xf]
    %v1012 = vld [vmem:[#allocation9 + $0x58] sm:$0xf]
    %v1013 = vld [vmem:[#allocation9 + $0x5c] sm:$0xf]
    %v1014 = vld [vmem:[#allocation9 + $0x60] sm:$0xf]
    %v1015 = vld [vmem:[#allocation9 + $0x64] sm:$0xf]
    %v1016 = vld [vmem:[#allocation9 + $0x68] sm:$0xf]
    %v1017 = vld [vmem:[#allocation9 + $0x6c] sm:$0xf]
    %v1018 = vld [vmem:[#allocation9 + $0x70] sm:$0xf]
    %v1019 = vld [vmem:[#allocation9 + $0x74] sm:$0xf]
    %v1020 = vld [vmem:[#allocation9 + $0x78] sm:$0xf]
    %v1021 = vld [vmem:[#allocation9 + $0x7c] sm:$0xf]
    %v1023 = vlaneseq
    %v1024 = vshrl.u32 %v1023, 7
    %v1025 = vsub.s32 0, %v1024
    %v1026 = vrot.slane %v191, %v1025
    %v1060 = vunpack.c.l.b16 %v990
    %v1061 = vunpack.c.l.b16 %v991
    %v1062 = vunpack.c.l.b16 %v992
    %v1063 = vunpack.c.l.b16 %v993
    %v1064 = vunpack.c.l.b16 %v994
    %v1065 = vunpack.c.l.b16 %v995
    %v1066 = vunpack.c.l.b16 %v996
    %v1067 = vunpack.c.l.b16 %v997
    %v1068 = vunpack.c.l.b16 %v998
    %v1069 = vunpack.c.l.b16 %v999
    %v1070 = vunpack.c.l.b16 %v1000
    %v1071 = vunpack.c.l.b16 %v1001
    %v1072 = vunpack.c.l.b16 %v1002
    %v1073 = vunpack.c.l.b16 %v1003
    %v1074 = vunpack.c.l.b16 %v1004
    %v1075 = vunpack.c.l.b16 %v1005
    %v1076 = vunpack.c.l.b16 %v1006
    %v1077 = vunpack.c.l.b16 %v1007
    %v1078 = vunpack.c.l.b16 %v1008
    %v1079 = vunpack.c.l.b16 %v1009
    %v1080 = vunpack.c.l.b16 %v1010
    %v1081 = vunpack.c.l.b16 %v1011
    %v1082 = vunpack.c.l.b16 %v1012
    %v1083 = vunpack.c.l.b16 %v1013
    %v1084 = vunpack.c.l.b16 %v1014
    %v1085 = vunpack.c.l.b16 %v1015
    %v1086 = vunpack.c.l.b16 %v1016
    %v1087 = vunpack.c.l.b16 %v1017
    %v1088 = vunpack.c.l.b16 %v1018
    %v1089 = vunpack.c.l.b16 %v1019
    %v1090 = vunpack.c.l.b16 %v1020
    %v1091 = vunpack.c.l.b16 %v1021
    %v1092 = vpack.c.b16 %v1061, %v1060
    %v1093 = vpack.c.b16 %v1063, %v1062
    %v1094 = vpack.c.b16 %v1065, %v1064
    %v1095 = vpack.c.b16 %v1067, %v1066
    %v1096 = vpack.c.b16 %v1069, %v1068
    %v1097 = vpack.c.b16 %v1071, %v1070
    %v1098 = vpack.c.b16 %v1073, %v1072
    %v1099 = vpack.c.b16 %v1075, %v1074
    %v1100 = vpack.c.b16 %v1077, %v1076
    %v1101 = vpack.c.b16 %v1079, %v1078
    %v1102 = vpack.c.b16 %v1081, %v1080
    %v1103 = vpack.c.b16 %v1083, %v1082
    %v1104 = vpack.c.b16 %v1085, %v1084
    %v1105 = vpack.c.b16 %v1087, %v1086
    %v1106 = vpack.c.b16 %v1089, %v1088
    %v1107 = vpack.c.b16 %v1091, %v1090
    %1124 = vmatprep.subr.bf16.mxu0 0
    %1125 = vmatpush1.bf16.msra.mxu0 %v1092
    %1126 = vmatprep.subr.bf16.mxu0 0
    %1127 = vmatpush1.bf16.msra.mxu0 %v1093
    %1128 = vmatprep.subr.bf16.mxu0 0
    %1129 = vmatpush1.bf16.msra.mxu0 %v1094
    %1130 = vmatprep.subr.bf16.mxu0 0
    %1131 = vmatpush1.bf16.msra.mxu0 %v1095
    %1132 = vmatprep.subr.bf16.mxu0 0
    %1133 = vmatpush1.bf16.msra.mxu0 %v1096
    %1134 = vmatprep.subr.bf16.mxu0 0
    %1135 = vmatpush1.bf16.msra.mxu0 %v1097
    %1136 = vmatprep.subr.bf16.mxu0 0
    %1137 = vmatpush1.bf16.msra.mxu0 %v1098
    %1138 = vmatprep.subr.bf16.mxu0 0
    %1139 = vmatpush1.bf16.msra.mxu0 %v1099
    %1140 = vmatprep.subr.bf16.mxu0 0
    %1141 = vmatpush1.bf16.msra.mxu0 %v1100
    %1142 = vmatprep.subr.bf16.mxu0 0
    %1143 = vmatpush1.bf16.msra.mxu0 %v1101
    %1144 = vmatprep.subr.bf16.mxu0 0
    %1145 = vmatpush1.bf16.msra.mxu0 %v1102
    %1146 = vmatprep.subr.bf16.mxu0 0
    %1147 = vmatpush1.bf16.msra.mxu0 %v1103
    %1148 = vmatprep.subr.bf16.mxu0 0
    %1149 = vmatpush1.bf16.msra.mxu0 %v1104
    %1150 = vmatprep.subr.bf16.mxu0 0
    %1151 = vmatpush1.bf16.msra.mxu0 %v1105
    %1152 = vmatprep.subr.bf16.mxu0 0
    %1153 = vmatpush1.bf16.msra.mxu0 %v1106
    %1154 = vmatprep.subr.bf16.mxu0 0
    %1155 = vmatpush1.bf16.msra.mxu0 %v1107
    %1156 = vmatprep.mubr.bf16.mxu0 %v989
    %1157 = vmatmul.mubr.bf16.gmra.mrb[0].mxu0 %v988
    %v1158 = vpop.f32.mrb[0].mxu0
    %v1159 = vadd.f32 %v1026, %v1158
    %v1160 = vpop.f32.mrb[0].mxu0
    %v1161 = vpop.f32.mrb[0].mxu0
    %v1162 = vpop.f32.mrb[0].mxu0
    %1163 = vdwg.mxu0
    %vm1164 = vcmp.gt.f32.partialorder %v1159, 0.0
    %v1165 = vmul.f32 %v1159, 0.01
    %v1166 = vsel %vm1164, %v1159, %v1165
    %v1167 = vpack.c.bf16 %v1166, %v1166
    %v1168 = vld [vmem:[#allocation9 + $0x80] sm:$0xf]
    %v1169 = vld [vmem:[#allocation9 + $0x84] sm:$0xf]
    %v1170 = vld [vmem:[#allocation9 + $0x88] sm:$0xf]
    %v1171 = vld [vmem:[#allocation9 + $0x8c] sm:$0xf]
    %v1172 = vld [vmem:[#allocation9 + $0x90] sm:$0xf]
    %v1173 = vld [vmem:[#allocation9 + $0x94] sm:$0xf]
    %v1174 = vld [vmem:[#allocation9 + $0x98] sm:$0xf]
    %v1175 = vld [vmem:[#allocation9 + $0x9c] sm:$0xf]
    %v1176 = vld [vmem:[#allocation9 + $0xa0] sm:$0xf]
    %v1177 = vld [vmem:[#allocation9 + $0xa4] sm:$0xf]
    %v1178 = vld [vmem:[#allocation9 + $0xa8] sm:$0xf]
    %v1179 = vld [vmem:[#allocation9 + $0xac] sm:$0xf]
    %v1180 = vld [vmem:[#allocation9 + $0xb0] sm:$0xf]
    %v1181 = vld [vmem:[#allocation9 + $0xb4] sm:$0xf]
    %v1182 = vld [vmem:[#allocation9 + $0xb8] sm:$0xf]
    %v1183 = vld [vmem:[#allocation9 + $0xbc] sm:$0xf]
    %v1185 = vlaneseq
    %v1186 = vshrl.u32 %v1185, 7
    %v1187 = vsub.s32 0, %v1186
    %v1188 = vrot.slane %v192, %v1187
    %v1206 = vunpack.c.l.b16 %v1168
    %v1207 = vunpack.c.l.b16 %v1169
    %v1208 = vunpack.c.l.b16 %v1170
    %v1209 = vunpack.c.l.b16 %v1171
    %v1210 = vunpack.c.l.b16 %v1172
    %v1211 = vunpack.c.l.b16 %v1173
    %v1212 = vunpack.c.l.b16 %v1174
    %v1213 = vunpack.c.l.b16 %v1175
    %v1214 = vunpack.c.l.b16 %v1176
    %v1215 = vunpack.c.l.b16 %v1177
    %v1216 = vunpack.c.l.b16 %v1178
    %v1217 = vunpack.c.l.b16 %v1179
    %v1218 = vunpack.c.l.b16 %v1180
    %v1219 = vunpack.c.l.b16 %v1181
    %v1220 = vunpack.c.l.b16 %v1182
    %v1221 = vunpack.c.l.b16 %v1183
    %v1222 = vpack.c.b16 %v1207, %v1206
    %v1223 = vpack.c.b16 %v1209, %v1208
    %v1224 = vpack.c.b16 %v1211, %v1210
    %v1225 = vpack.c.b16 %v1213, %v1212
    %v1226 = vpack.c.b16 %v1215, %v1214
    %v1227 = vpack.c.b16 %v1217, %v1216
    %v1228 = vpack.c.b16 %v1219, %v1218
    %v1229 = vpack.c.b16 %v1221, %v1220
    %1238 = vmatprep.subr.bf16.mxu0 0
    %1239 = vmatpush1.bf16.msra.mxu0 %v1222
    %1240 = vmatprep.subr.bf16.mxu0 0
    %1241 = vmatpush1.bf16.msra.mxu0 %v1223
    %1242 = vmatprep.subr.bf16.mxu0 0
    %1243 = vmatpush1.bf16.msra.mxu0 %v1224
    %1244 = vmatprep.subr.bf16.mxu0 0
    %1245 = vmatpush1.bf16.msra.mxu0 %v1225
    %1246 = vmatprep.subr.bf16.mxu0 0
    %1247 = vmatpush1.bf16.msra.mxu0 %v1226
    %1248 = vmatprep.subr.bf16.mxu0 0
    %1249 = vmatpush1.bf16.msra.mxu0 %v1227
    %1250 = vmatprep.subr.bf16.mxu0 0
    %1251 = vmatpush1.bf16.msra.mxu0 %v1228
    %1252 = vmatprep.subr.bf16.mxu0 0
    %1253 = vmatpush1.bf16.msra.mxu0 %v1229
    %1254 = vmatprep.subr.bf16.mxu0 0
    %1255 = vmatpush1.bf16.msra.mxu0 0
    %1256 = vmatprep.subr.bf16.mxu0 0
    %1257 = vmatpush1.bf16.msra.mxu0 0
    %1258 = vmatprep.subr.bf16.mxu0 0
    %1259 = vmatpush1.bf16.msra.mxu0 0
    %1260 = vmatprep.subr.bf16.mxu0 0
    %1261 = vmatpush1.bf16.msra.mxu0 0
    %1262 = vmatprep.subr.bf16.mxu0 0
    %1263 = vmatpush1.bf16.msra.mxu0 0
    %1264 = vmatprep.subr.bf16.mxu0 0
    %1265 = vmatpush1.bf16.msra.mxu0 0
    %1266 = vmatprep.subr.bf16.mxu0 0
    %1267 = vmatpush1.bf16.msra.mxu0 0
    %1268 = vmatprep.subr.bf16.mxu0 0
    %1269 = vmatpush1.bf16.msra.mxu0 0
    %1270 = vmatprep.mubr.bf16.mxu0 0
    %1271 = vmatmul.mubr.bf16.gmra.mrb[0].mxu0 %v1167
    %v1272 = vpop.f32.mrb[0].mxu0
    %v1273 = vadd.f32 %v1188, %v1272
    %v1274 = vpop.f32.mrb[0].mxu0
    %v1275 = vpop.f32.mrb[0].mxu0
    %v1276 = vpop.f32.mrb[0].mxu0
    %1277 = vdwg.mxu0
    %vm1278 = vcmp.gt.f32.partialorder %v1273, 0.0
    %v1279 = vmul.f32 %v1273, 0.01
    %v1280 = vsel %vm1278, %v1273, %v1279
    %v1281 = vpack.c.bf16 %v1280, %v1280
    %v1282 = vld [vmem:[#allocation9 + $0xc0] sm:$0xf]
    %v1283 = vld [vmem:[#allocation9 + $0xc4] sm:$0xf]
    %v1284 = vld [vmem:[#allocation9 + $0xc8] sm:$0xf]
    %v1285 = vld [vmem:[#allocation9 + $0xcc] sm:$0xf]
    %v1286 = vld [vmem:[#allocation9 + $0xd0] sm:$0xf]
    %v1287 = vld [vmem:[#allocation9 + $0xd4] sm:$0xf]
    %v1288 = vld [vmem:[#allocation9 + $0xd8] sm:$0xf]
    %v1289 = vld [vmem:[#allocation9 + $0xdc] sm:$0xf]
    %v1290 = vld [vmem:[#allocation9 + $0xe0] sm:$0xf]
    %v1291 = vld [vmem:[#allocation9 + $0xe4] sm:$0xf]
    %v1292 = vld [vmem:[#allocation9 + $0xe8] sm:$0xf]
    %v1293 = vld [vmem:[#allocation9 + $0xec] sm:$0xf]
    %v1294 = vld [vmem:[#allocation9 + $0xf0] sm:$0xf]
    %v1295 = vld [vmem:[#allocation9 + $0xf4] sm:$0xf]
    %v1296 = vld [vmem:[#allocation9 + $0xf8] sm:$0xf]
    %v1297 = vld [vmem:[#allocation9 + $0xfc] sm:$0xf]
    %v1299 = vlaneseq
    %v1300 = vshrl.u32 %v1299, 7
    %v1301 = vsub.s32 0, %v1300
    %v1302 = vrot.slane %v193, %v1301
    %v1320 = vunpack.c.l.b16 %v1282
    %v1321 = vunpack.c.l.b16 %v1283
    %v1322 = vunpack.c.l.b16 %v1284
    %v1323 = vunpack.c.l.b16 %v1285
    %v1324 = vunpack.c.l.b16 %v1286
    %v1325 = vunpack.c.l.b16 %v1287
    %v1326 = vunpack.c.l.b16 %v1288
    %v1327 = vunpack.c.l.b16 %v1289
    %v1328 = vunpack.c.l.b16 %v1290
    %v1329 = vunpack.c.l.b16 %v1291
    %v1330 = vunpack.c.l.b16 %v1292
    %v1331 = vunpack.c.l.b16 %v1293
    %v1332 = vunpack.c.l.b16 %v1294
    %v1333 = vunpack.c.l.b16 %v1295
    %v1334 = vunpack.c.l.b16 %v1296
    %v1335 = vunpack.c.l.b16 %v1297
    %v1336 = vpack.c.b16 %v1321, %v1320
    %v1337 = vpack.c.b16 %v1323, %v1322
    %v1338 = vpack.c.b16 %v1325, %v1324
    %v1339 = vpack.c.b16 %v1327, %v1326
    %v1340 = vpack.c.b16 %v1329, %v1328
    %v1341 = vpack.c.b16 %v1331, %v1330
    %v1342 = vpack.c.b16 %v1333, %v1332
    %v1343 = vpack.c.b16 %v1335, %v1334
    %1352 = vmatprep.subr.bf16.mxu0 0
    %1353 = vmatpush1.bf16.msra.mxu0 %v1336
    %1354 = vmatprep.subr.bf16.mxu0 0
    %1355 = vmatpush1.bf16.msra.mxu0 %v1337
    %1356 = vmatprep.subr.bf16.mxu0 0
    %1357 = vmatpush1.bf16.msra.mxu0 %v1338
    %1358 = vmatprep.subr.bf16.mxu0 0
    %1359 = vmatpush1.bf16.msra.mxu0 %v1339
    %1360 = vmatprep.subr.bf16.mxu0 0
    %1361 = vmatpush1.bf16.msra.mxu0 %v1340
    %1362 = vmatprep.subr.bf16.mxu0 0
    %1363 = vmatpush1.bf16.msra.mxu0 %v1341
    %1364 = vmatprep.subr.bf16.mxu0 0
    %1365 = vmatpush1.bf16.msra.mxu0 %v1342
    %1366 = vmatprep.subr.bf16.mxu0 0
    %1367 = vmatpush1.bf16.msra.mxu0 %v1343
    %1368 = vmatprep.subr.bf16.mxu0 0
    %1369 = vmatpush1.bf16.msra.mxu0 0
    %1370 = vmatprep.subr.bf16.mxu0 0
    %1371 = vmatpush1.bf16.msra.mxu0 0
    %1372 = vmatprep.subr.bf16.mxu0 0
    %1373 = vmatpush1.bf16.msra.mxu0 0
    %1374 = vmatprep.subr.bf16.mxu0 0
    %1375 = vmatpush1.bf16.msra.mxu0 0
    %1376 = vmatprep.subr.bf16.mxu0 0
    %1377 = vmatpush1.bf16.msra.mxu0 0
    %1378 = vmatprep.subr.bf16.mxu0 0
    %1379 = vmatpush1.bf16.msra.mxu0 0
    %1380 = vmatprep.subr.bf16.mxu0 0
    %1381 = vmatpush1.bf16.msra.mxu0 0
    %1382 = vmatprep.subr.bf16.mxu0 0
    %1383 = vmatpush1.bf16.msra.mxu0 0
    %1384 = vmatprep.mubr.bf16.mxu0 0
    %1385 = vmatmul.mubr.bf16.gmra.mrb[0].mxu0 %v1281
    %v1386 = vpop.f32.mrb[0].mxu0
    %v1387 = vadd.f32 %v1302, %v1386
    %v1388 = vpop.f32.mrb[0].mxu0
    %v1389 = vpop.f32.mrb[0].mxu0
    %v1390 = vpop.f32.mrb[0].mxu0
    %1391 = vdwg.mxu0
    %v1392 = vxor.u32 %v1387, 2147483648
    %v1393 = vmul.f32 %v1392, 1.442695
    %v1394 = vpow.pop %v1393
    %v1395 = vadd.f32 %v1394, 1.0
    %v1396 = vrcp.pop %v1395
    %v1397 = vmul.f32 1.0, %v1396
    %1398 = vst [vmem:[%s6] sm:$0xff] %v1397
    // Predicated region
    $region50: #{classifier_forward.1} parent=1 // pred_check
      _
    $region51: #{classifier_forward.1} parent=1 // pred_check_branch
      %1400 = sbr.rel (0) target = $region53
    $region52: #{classifier_forward.1} parent=1 // pred_region
      _
    $region53: #{classifier_forward.1} parent=1 // pred_fallthru
      _
    // Predicated region
    $region54: #{classifier_forward.1} parent=1 // pred_check
      _
    $region55: #{classifier_forward.1} parent=1 // pred_check_branch
      %1402 = sbr.rel (0) target = $region57
    $region56: #{classifier_forward.1} parent=1 // pred_region
      _
    $region57: #{classifier_forward.1} parent=1 // pred_fallthru
      _
    %1403 = vsyncpa [#allocation3], 1
    %1404 = vsyncpa [#allocation5], 1
    %1405 = vsyncpa [#allocation8], 1
    %1406 = vsyncpa [#allocation11], 1

</llo_original>
